<compile_context>
chip_gen: v7x
topology: tpu7x:2x2x1
jax: 0.10.0
libtpu: 0.0.40
codegen_flags: <defaults>
</compile_context>

<pallas_src>
import jax
import jax.numpy as jnp
from jax.experimental import pallas as pl
from jax.experimental.pallas import tpu as pltpu


def _nq_head_ce_kernel(x_ref, lab_ref, w1_ref, b1_ref, w2_ref, out_ref):
    # x_ref:   (Gt, C, H)  CLS embeddings (fused strided DMA; bf16 or f32)
    # lab_ref: (Gt, C)     int32 labels (1 == positive candidate)
    # w1_ref:  (H, H)      tok_dense.weight^T (x @ W layout), same dtype as x
    # b1_ref:  (1, H)      tok_dense.bias       (f32)
    # w2_ref:  (1, H)      tok_outputs.weight   (f32)
    # out_ref: (1, Gt, 2)  [..., 0] = nll (0 if ignored), [..., 1] = valid
    Gt, C, H = x_ref.shape

    # tok_dense: ONE flattened (Gt*C, H) @ (H, H) MXU matmul, f32 accumulation.
    # (Collapsing (Gt, C) is a free view as long as C is a multiple of the
    #  dtype sublane pack: 16 for bf16, 8 for f32.)
    x = x_ref[...].reshape(Gt * C, H)
    h = jnp.dot(x, w1_ref[...], preferred_element_type=jnp.float32)
    h = jnp.tanh(h + b1_ref[...].astype(jnp.float32))              # (Gt*C, H) f32
    h = h.reshape(Gt, C, H)

    # tok_outputs (H -> 1) + squeeze(-1): VPU multiply + lane reduction.
    # tok_outputs.bias omitted: log-softmax / CE is shift-invariant.
    w2 = w2_ref[...].astype(jnp.float32)                           # (1, H)
    logits = jnp.sum(h * w2[0], axis=-1)                           # (Gt, C) f32

    # In-kernel label prep: first candidate with label == 1 (matches the
    # python `for lab == 1` loop); groups with no positive are ignored.
    col = jax.lax.broadcasted_iota(jnp.int32, (Gt, C), 1)
    is_pos = lab_ref[...] == 1
    first_idx = jnp.min(jnp.where(is_pos, col, C), axis=-1, keepdims=True)
    onehot = jnp.logical_and(col == first_idx, first_idx < C)
    onehot = onehot.astype(jnp.float32)                            # all-zero if ignored

    # CrossEntropyLoss(ignore_index=-1) partials (mean reduction in wrapper).
    m = jnp.max(logits, axis=-1, keepdims=True)
    z = logits - m
    lse = jnp.log(jnp.sum(jnp.exp(z), axis=-1, keepdims=True))
    logp = z - lse                                                 # (Gt, C)
    nll = -jnp.sum(onehot * logp, axis=-1, keepdims=True)          # (Gt, 1)
    valid = jnp.sum(onehot, axis=-1, keepdims=True)                # (Gt, 1) 1.0/0.0
    out_ref[0] = jnp.concatenate([nll, valid], axis=-1)            # (Gt, 2)


def _resident_spec(shape):
    """Constant-index weight spec; single-buffered when the API allows it."""
    index_map = lambda g: (0,) * len(shape)
    try:
        return pl.BlockSpec(shape, index_map, pipeline_mode=pl.Buffered(1))
    except Exception:  # older jax: no Buffered / no pipeline_mode kwarg
        return pl.BlockSpec(shape, index_map)


def _choose_group_tile(G, C, H, x_itemsize, vmem_budget_bytes=8 << 20):
    """Pick the group tile gt: big (gt*C ~ 1024 MXU rows, 0.5-2 MiB x block)
    but bounded by an ~8 MiB per-step budget so the total footprint (plus the
    resident weights) stays under v5e's 16 MiB scoped-VMEM default and well
    under v7x's 32 MiB scoped / 64 MiB physical ceiling."""
    # Per-group footprint inside one step: x (double-buffered) + f32 tanh
    # intermediate + f32 softmax temporaries (slack).
    per_group = C * H * (2 * x_itemsize + 8)
    gt_budget = max(1, vmem_budget_bytes // per_group)
    gt_target = max(8, -(-1024 // C))          # aim for ~1024 rows in the matmul
    gt = max(8, min(gt_target, gt_budget))
    gt = min(gt, -(-G // 8) * 8)               # never (much) larger than G
    return max(8, (gt // 8) * 8)               # sublane-aligned tile


def nq_model_forward(sequence_output, labels_onehot, params):
    """Pallas forward. Returns the scalar loss (the labels != None path)."""
    G, C, S, H = sequence_output.shape
    assert H % 128 == 0, "CLS slice via BlockSpec needs H to be a lane multiple"
    w1, b1, w2, _b2 = params   # b2 unused in-kernel: CE is shift-invariant

    gt = _choose_group_tile(G, C, H, jnp.dtype(sequence_output.dtype).itemsize)
    G_pad = -(-G // gt) * gt
    if G_pad != G:
        # Padded groups have no positive label -> ignored -> contribute 0.
        sequence_output = jnp.pad(
            sequence_output, ((0, G_pad - G), (0, 0), (0, 0), (0, 0)))
        labels_onehot = jnp.pad(labels_onehot, ((0, G_pad - G), (0, 0)))

    # Free contiguous view: the CLS hidden vector is the first H lanes of each
    # (g, c) row of the (G, C, S*H) view; the BlockSpec reads ONLY those lanes
    # (fused strided CLS DMA, no x_cls materialised in HBM).
    # TODO(synk): per-row DMA granule is H*itemsize bytes (256 B at demo H=128,
    #             2 KiB at roberta-large H=1024); pre-pack CLS rows if H is small.
    seq_flat = sequence_output.reshape(G_pad, C, S * H)
    lab_i32 = labels_onehot.astype(jnp.int32)

    w1_k = w1.astype(seq_flat.dtype)                   # MXU operands in act dtype
    b1_2d = b1.reshape(1, H).astype(jnp.float32)
    w2_2d = w2.reshape(1, H).astype(jnp.float32)

    n_tiles = G_pad // gt
    out = pl.pallas_call(
        _nq_head_ce_kernel,
        grid=(n_tiles,),
        in_specs=[
            # Fused CLS slice: block 0 along the S*H axis == elements [0:H].
            pl.BlockSpec((gt, C, H), lambda g: (g, 0, 0)),
            pl.BlockSpec((gt, C), lambda g: (g, 0)),
            _resident_spec((H, H)),                    # tok_dense.weight^T
            _resident_spec((1, H)),                    # tok_dense.bias
            _resident_spec((1, H)),                    # tok_outputs.weight
        ],
        out_specs=pl.BlockSpec((1, gt, 2), lambda g: (g, 0, 0)),
        out_shape=jax.ShapeDtypeStruct((n_tiles, gt, 2), jnp.float32),
        compiler_params=pltpu.CompilerParams(
            dimension_semantics=("parallel",),
            vmem_limit_bytes=32 * 1024 * 1024),
    )(seq_flat, lab_i32, w1_k, b1_2d, w2_2d)

    # CrossEntropyLoss reduction='mean' over non-ignored targets.
    # (All-ignored batches give 0/0 = NaN, matching PyTorch behavior.)
    return jnp.sum(out[..., 0]) / jnp.sum(out[..., 1])


def nq_model_forward_ref(sequence_output, labels_onehot, params):
    """Pure-JAX reference mirroring the PyTorch forward (eval-mode dropout)."""
    w1, b1, w2, b2 = params
    x = sequence_output[:, :, 0, :].astype(jnp.float32)
    h = jnp.tanh(jnp.einsum('gch,hd->gcd', x, w1.astype(jnp.float32))
                 + b1.astype(jnp.float32))
    logits = (jnp.einsum('gch,h->gc', h, w2.astype(jnp.float32))
              + b2.astype(jnp.float32))                                   # (G, C)
    has_pos = jnp.sum(labels_onehot == 1, axis=-1) > 0
    tgt = jnp.where(has_pos, jnp.argmax(labels_onehot == 1, axis=-1), -1)
    logp = jax.nn.log_softmax(logits, axis=-1)
    valid = (tgt != -1).astype(jnp.float32)
    safe_tgt = jnp.where(tgt != -1, tgt, 0)
    nll = -jnp.take_along_axis(logp, safe_tgt[:, None], axis=-1)[:, 0]
    return jnp.sum(nll * valid) / jnp.sum(valid)


if __name__ == "__main__":
    # Small shapes: G groups, C candidates/group, S seq_len, H hidden.
    G, C, S, H = 16, 16, 16, 128

    key = jax.random.PRNGKey(0)
    k_seq, k_w1, k_b1, k_w2, k_b2, k_lab = jax.random.split(key, 6)

    # Synthetic backbone output ("sequence_output" from RoBERTa), bf16 as a
    # TPU backbone would emit.
    sequence_output = (jax.random.normal(k_seq, (G, C, S, H), dtype=jnp.float32)
                       * 0.5).astype(jnp.bfloat16)

    # Deterministic head parameters (shapes from tok_dense / tok_outputs).
    w1 = (jax.random.normal(k_w1, (H, H), dtype=jnp.float32) * 0.02
          ).astype(jnp.bfloat16)                                  # tok_dense.weight.T
    b1 = jax.random.normal(k_b1, (H,), dtype=jnp.float32) * 0.02  # tok_dense.bias
    w2 = jax.random.normal(k_w2, (H,), dtype=jnp.float32) * 0.02  # tok_outputs.weight
    b2 = jax.random.normal(k_b2, (1,), dtype=jnp.float32) * 0.02  # tok_outputs.bias
    params = (w1, b1, w2, b2)

    # One-hot labels: exactly one positive candidate per group (module assumption).
    pos = jax.random.randint(k_lab, (G,), 0, C)
    labels_onehot = (jax.lax.broadcasted_iota(jnp.int32, (G, C), 1)
                     == pos[:, None]).astype(jnp.int32)

    loss = jax.block_until_ready(
        nq_model_forward(sequence_output, labels_onehot, params))
    loss_ref = jax.block_until_ready(
        nq_model_forward_ref(sequence_output, labels_onehot, params))

    assert jnp.isfinite(loss), f"non-finite loss: {loss}"
    assert jnp.allclose(loss, loss_ref, rtol=5e-3, atol=5e-3), (loss, loss_ref)
    print("KERNEL_OK")
</pallas_src>

<mosaic_0001>
module attributes {stable_mosaic.version = 11 : i64} {
  func.func @_nq_head_ce_kernel(%arg0: i32, %arg1: memref<16x16x128xbf16, #tpu.memory_space<vmem>>, %arg2: memref<16x16xi32, #tpu.memory_space<vmem>>, %arg3: memref<128x128xbf16, #tpu.memory_space<vmem>>, %arg4: memref<1x128xf32, #tpu.memory_space<vmem>>, %arg5: memref<1x128xf32, #tpu.memory_space<vmem>>, %arg6: memref<1x16x2xf32, #tpu.memory_space<vmem>>) attributes {dimension_semantics = [#tpu.dimension_semantics<parallel>], iteration_bounds = array<i64: 1>, scalar_prefetch = 0 : i64, scratch_operands = 0 : i64, tpu.core_type = #tpu.core_type<tc>, window_params = [{transform_indices = @transform_0, window_bounds = array<i64: 16, 16, 128>}, {transform_indices = @transform_1, window_bounds = array<i64: 16, 16>}, {pipeline_mode = #tpu.pipeline_mode<synchronous>, transform_indices = @transform_2, window_bounds = array<i64: 128, 128>}, {pipeline_mode = #tpu.pipeline_mode<synchronous>, transform_indices = @transform_3, window_bounds = array<i64: 1, 128>}, {pipeline_mode = #tpu.pipeline_mode<synchronous>, transform_indices = @transform_4, window_bounds = array<i64: 1, 128>}, {transform_indices = @transform_5, window_bounds = array<i64: 1, 16, 2>}]} {
    %c0 = arith.constant 0 : index
    %c0_0 = arith.constant 0 : index
    %c0_1 = arith.constant 0 : index
    %0 = vector.load %arg1[%c0, %c0_0, %c0_1] : memref<16x16x128xbf16, #tpu.memory_space<vmem>>, vector<16x16x128xbf16>
    %1 = vector.shape_cast %0 : vector<16x16x128xbf16> to vector<256x128xbf16>
    %c0_2 = arith.constant 0 : index
    %c0_3 = arith.constant 0 : index
    %2 = vector.load %arg3[%c0_2, %c0_3] : memref<128x128xbf16, #tpu.memory_space<vmem>>, vector<128x128xbf16>
    %cst = arith.constant dense<0.000000e+00> : vector<256x128xf32>
    %3 = tpu.matmul %1, %2, %cst {dimension_numbers = #tpu.dot_dimension_numbers<[1], [0], [0], [1], [0, 0, 1, 1], [], []>} : vector<256x128xbf16>, vector<128x128xbf16>, vector<256x128xf32> -> vector<256x128xf32>
    %c0_4 = arith.constant 0 : index
    %c0_5 = arith.constant 0 : index
    %4 = vector.load %arg4[%c0_4, %c0_5] : memref<1x128xf32, #tpu.memory_space<vmem>>, vector<1x128xf32>
    %5 = vector.broadcast %4 : vector<1x128xf32> to vector<256x128xf32>
    %6 = arith.addf %3, %5 : vector<256x128xf32>
    %7 = math.tanh %6 : vector<256x128xf32>
    %8 = vector.shape_cast %7 : vector<256x128xf32> to vector<16x16x128xf32>
    %c0_6 = arith.constant 0 : index
    %c0_7 = arith.constant 0 : index
    %9 = vector.load %arg5[%c0_6, %c0_7] : memref<1x128xf32, #tpu.memory_space<vmem>>, vector<1x128xf32>
    %10 = vector.shape_cast %9 : vector<1x128xf32> to vector<128xf32>
    %11 = vector.shape_cast %10 : vector<128xf32> to vector<1x1x128xf32>
    %12 = vector.broadcast %11 : vector<1x1x128xf32> to vector<16x16x128xf32>
    %13 = arith.mulf %8, %12 : vector<16x16x128xf32>
    %cst_8 = arith.constant dense<0.000000e+00> : vector<16x16xf32>
    %14 = vector.multi_reduction <add>, %13, %cst_8 [2] : vector<16x16x128xf32> to vector<16x16xf32>
    %15 = tpu.iota {dimensions = array<i32: 1>} : vector<16x16xi32>
    %c0_9 = arith.constant 0 : index
    %c0_10 = arith.constant 0 : index
    %16 = vector.load %arg2[%c0_9, %c0_10] : memref<16x16xi32, #tpu.memory_space<vmem>>, vector<16x16xi32>
    %c1_i32 = arith.constant 1 : i32
    %17 = vector.broadcast %c1_i32 : i32 to vector<16x16xi32>
    %18 = arith.cmpi eq, %16, %17 : vector<16x16xi32>
    %c16_i32 = arith.constant 16 : i32
    %19 = vector.broadcast %c16_i32 : i32 to vector<16x16xi32>
    %20 = arith.select %18, %15, %19 : vector<16x16xi1>, vector<16x16xi32>
    %cst_11 = arith.constant dense<2147483647> : vector<16xi32>
    %21 = vector.multi_reduction <minsi>, %20, %cst_11 [1] : vector<16x16xi32> to vector<16xi32>
    %22 = vector.shape_cast %21 : vector<16xi32> to vector<16x1xi32>
    %23 = vector.broadcast %22 : vector<16x1xi32> to vector<16x16xi32>
    %24 = arith.cmpi eq, %15, %23 : vector<16x16xi32>
    %c16_i32_12 = arith.constant 16 : i32
    %25 = vector.broadcast %c16_i32_12 : i32 to vector<16x1xi32>
    %26 = arith.cmpi slt, %22, %25 : vector<16x1xi32>
    %27 = vector.broadcast %26 : vector<16x1xi1> to vector<16x16xi1>
    %28 = arith.andi %24, %27 : vector<16x16xi1>
    %29 = arith.extui %28 : vector<16x16xi1> to vector<16x16xi32>
    %30 = arith.sitofp %29 : vector<16x16xi32> to vector<16x16xf32>
    %cst_13 = arith.constant dense<0xFF800000> : vector<16xf32>
    %31 = vector.multi_reduction <maximumf>, %14, %cst_13 [1] : vector<16x16xf32> to vector<16xf32>
    %32 = vector.shape_cast %31 : vector<16xf32> to vector<16x1xf32>
    %33 = vector.broadcast %32 : vector<16x1xf32> to vector<16x16xf32>
    %34 = arith.subf %14, %33 : vector<16x16xf32>
    %35 = math.exp %34 : vector<16x16xf32>
    %cst_14 = arith.constant dense<0.000000e+00> : vector<16xf32>
    %36 = vector.multi_reduction <add>, %35, %cst_14 [1] : vector<16x16xf32> to vector<16xf32>
    %37 = vector.shape_cast %36 : vector<16xf32> to vector<16x1xf32>
    %38 = math.log %37 : vector<16x1xf32>
    %39 = vector.broadcast %38 : vector<16x1xf32> to vector<16x16xf32>
    %40 = arith.subf %34, %39 : vector<16x16xf32>
    %41 = arith.mulf %30, %40 : vector<16x16xf32>
    %cst_15 = arith.constant dense<0.000000e+00> : vector<16xf32>
    %42 = vector.multi_reduction <add>, %41, %cst_15 [1] : vector<16x16xf32> to vector<16xf32>
    %43 = vector.shape_cast %42 : vector<16xf32> to vector<16x1xf32>
    %cst_16 = arith.constant 0.000000e+00 : f32
    %44 = vector.broadcast %cst_16 : f32 to vector<16x1xf32>
    %45 = arith.subf %44, %43 : vector<16x1xf32>
    %cst_17 = arith.constant dense<0.000000e+00> : vector<16xf32>
    %46 = vector.multi_reduction <add>, %30, %cst_17 [1] : vector<16x16xf32> to vector<16xf32>
    %47 = vector.shape_cast %46 : vector<16xf32> to vector<16x1xf32>
    %48 = tpu.concatenate %45, %47 in 1 : vector<16x1xf32>, vector<16x1xf32> -> vector<16x2xf32>
    %c0_18 = arith.constant 0 : index
    %c0_19 = arith.constant 0 : index
    %c0_20 = arith.constant 0 : index
    %49 = vector.load %arg6[%c0_18, %c0_19, %c0_20] : memref<1x16x2xf32, #tpu.memory_space<vmem>>, vector<1x16x2xf32>
    %50 = vector.shape_cast %49 : vector<1x16x2xf32> to vector<16x2xf32>
    %51 = vector.shape_cast %48 : vector<16x2xf32> to vector<1x16x2xf32>
    tpu.vector_store %arg6[%c0_18, %c0_19, %c0_20], %51 {strides = array<i32>} : memref<1x16x2xf32, #tpu.memory_space<vmem>>, vector<1x16x2xf32>,
    return
  }
  func.func @transform_0(%arg0: i32) -> (i32, i32, i32) {
    %c0_i32 = arith.constant 0 : i32
    %c0_i32_0 = arith.constant 0 : i32
    %c0_i32_1 = arith.constant 0 : i32
    return %arg0, %c0_i32, %c0_i32_0 : i32, i32, i32
  }
  func.func @transform_1(%arg0: i32) -> (i32, i32) {
    %c0_i32 = arith.constant 0 : i32
    %c0_i32_0 = arith.constant 0 : i32
    return %arg0, %c0_i32 : i32, i32
  }
  func.func @transform_2(%arg0: i32) -> (i32, i32) {
    %c0_i32 = arith.constant 0 : i32
    %c0_i32_0 = arith.constant 0 : i32
    %c0_i32_1 = arith.constant 0 : i32
    return %c0_i32, %c0_i32_0 : i32, i32
  }
  func.func @transform_3(%arg0: i32) -> (i32, i32) {
    %c0_i32 = arith.constant 0 : i32
    %c0_i32_0 = arith.constant 0 : i32
    %c0_i32_1 = arith.constant 0 : i32
    return %c0_i32, %c0_i32_0 : i32, i32
  }
  func.func @transform_4(%arg0: i32) -> (i32, i32) {
    %c0_i32 = arith.constant 0 : i32
    %c0_i32_0 = arith.constant 0 : i32
    %c0_i32_1 = arith.constant 0 : i32
    return %c0_i32, %c0_i32_0 : i32, i32
  }
  func.func @transform_5(%arg0: i32) -> (i32, i32, i32) {
    %c0_i32 = arith.constant 0 : i32
    %c0_i32_0 = arith.constant 0 : i32
    %c0_i32_1 = arith.constant 0 : i32
    return %arg0, %c0_i32, %c0_i32_0 : i32, i32, i32
  }
}

</mosaic_0001>

<llo_original>
// kernel: tpu_custom_call.1
$region0: #{tpu_custom_call.1}
  #allocation0 [shape = 'u32[]', space=smem, size = 0x4, offset = 0x4, fixed_abs, tag = 'smem constant byte address 0x4 - core index']
  #allocation1 [shape = 'u32[144,128]{1,0:T(1,128)}', space=vmem, size = 0x12000, scoped, tag = 'internal scratch']
  %s0 = inlined_call_operand.hbm [shape: bf16[16,16,2048], index: 0, kind: input, shape index: {}]
  %s1 = inlined_call_operand.hbm [shape: s32[16,16], index: 1, kind: input, shape index: {}]
  %s2 = inlined_call_operand.hbm [shape: bf16[128,128], index: 2, kind: input, shape index: {}]
  %s3 = inlined_call_operand.vmem [shape: f32[1,128], index: 3, kind: input, shape index: {}]
  %s4 = inlined_call_operand.vmem [shape: f32[1,128], index: 4, kind: input, shape index: {}]
  %s5 = inlined_call_operand.vmem [shape: f32[1,16,2], index: 5, kind: output, shape index: {}]
  %s6 = sld [smem:[#allocation0]]
  $region42: #{tpu_custom_call.1} parent=0
    _
  %s8 = ssub.s32 1, %s6
  %s9 = scalar_select 0, %s8, %s6
  $region1: #{tpu_custom_call.1} parent=0
    #allocation2 [shape = 'u8[65536]{0}', space=vmem, size = 0x10000, scoped, tag = 'input window, operand 0, single buffered']
    #allocation3 [shape = 's32[1]{0}', space=sflag, size = 0x4, scoped, tag = 'scoped memory for tpu_custom_call.1']
    #allocation4 [shape = 'u8[8192]{0}', space=vmem, size = 0x2000, scoped, tag = 'input window, operand 1, single buffered']
    #allocation5 [shape = 's32[1]{0}', space=sflag, size = 0x4, scoped, tag = 'scoped memory for tpu_custom_call.1']
    #allocation6 [shape = 'u8[32768]{0}', space=vmem, size = 0x8000, scoped, tag = 'input window, operand 2, single buffered']
    %10 = vsyncpa [#allocation3], 0
    %11 = vsyncpa [#allocation5], 0
    // Predicated region
    $region2: #{tpu_custom_call.1} parent=1 // pred_check
      _
    $region3: #{tpu_custom_call.1} parent=1 // pred_check_branch
      %13 = sbr.rel (0) target = $region5
    $region4: #{tpu_custom_call.1} parent=1 // pred_region
      %s15 = ssub.s32 2048, 2048
      %16 = vsyncadd [#allocation3], %s15
      %s17 = sshll.u32 [#allocation2], 4
      %s18 = int_to_ptr.vmem [resolvable:$true] %s17
      %23 = dma.hbm_to_vmem [thread:$0]  %s0, 2048, %s18, [#allocation3], 1024, 64, 4
    $region5: #{tpu_custom_call.1} parent=1 // pred_fallthru
      _
    // Predicated region
    $region6: #{tpu_custom_call.1} parent=1 // pred_check
      _
    $region7: #{tpu_custom_call.1} parent=1 // pred_check_branch
      %25 = sbr.rel (0) target = $region9
    $region8: #{tpu_custom_call.1} parent=1 // pred_region
      %s27 = ssub.s32 256, 256
      %28 = vsyncadd [#allocation5], %s27
      %s29 = sshll.u32 [#allocation4], 4
      %s30 = int_to_ptr.vmem [resolvable:$true] %s29
      %35 = dma.hbm_to_vmem [thread:$0]  %s1, 256, %s30, [#allocation5], 128, 128, 8
    $region9: #{tpu_custom_call.1} parent=1 // pred_fallthru
      _
    // Predicated region
    $region10: #{tpu_custom_call.1} parent=1 // pred_check
      _
    $region11: #{tpu_custom_call.1} parent=1 // pred_check_branch
      %37 = sbr.rel (0) target = $region13
    $region12: #{tpu_custom_call.1} parent=1 // pred_region
      %s39 = ssub.s32 1024, 1024
      %40 = vsyncadd [#allocation5], %s39
      %s41 = sshll.u32 [#allocation6], 4
      %s42 = int_to_ptr.vmem [resolvable:$true] %s41
      %47 = dma.hbm_to_vmem [thread:$0]  %s2, 1024, %s42, [#allocation5], 64, 64, 4
    $region13: #{tpu_custom_call.1} parent=1 // pred_fallthru
      _
    // Predicated region
    $region14: #{tpu_custom_call.1} parent=1 // pred_check
      _
    $region15: #{tpu_custom_call.1} parent=1 // pred_check_branch
      %49 = sbr.rel (0) target = $region17
    $region16: #{tpu_custom_call.1} parent=1 // pred_region
      _
    $region17: #{tpu_custom_call.1} parent=1 // pred_fallthru
      _
    // Predicated region
    $region18: #{tpu_custom_call.1} parent=1 // pred_check
      _
    $region19: #{tpu_custom_call.1} parent=1 // pred_check_branch
      %51 = sbr.rel (0) target = $region21
    $region20: #{tpu_custom_call.1} parent=1 // pred_region
      _
    $region21: #{tpu_custom_call.1} parent=1 // pred_fallthru
      _
    // Predicated region
    $region22: #{tpu_custom_call.1} parent=1 // pred_check
      _
    $region23: #{tpu_custom_call.1} parent=1 // pred_check_branch
      %53 = sbr.rel (0) target = $region25
    $region24: #{tpu_custom_call.1} parent=1 // pred_region
      %54 = dma.done [#allocation3], 2048
    $region25: #{tpu_custom_call.1} parent=1 // pred_fallthru
      _
    // Predicated region
    $region26: #{tpu_custom_call.1} parent=1 // pred_check
      _
    $region27: #{tpu_custom_call.1} parent=1 // pred_check_branch
      %56 = sbr.rel (0) target = $region29
    $region28: #{tpu_custom_call.1} parent=1 // pred_region
      %57 = dma.done [#allocation5], 256
    $region29: #{tpu_custom_call.1} parent=1 // pred_fallthru
      _
    // Predicated region
    $region30: #{tpu_custom_call.1} parent=1 // pred_check
      _
    $region31: #{tpu_custom_call.1} parent=1 // pred_check_branch
      %59 = sbr.rel (0) target = $region33
    $region32: #{tpu_custom_call.1} parent=1 // pred_region
      %60 = dma.done [#allocation5], 1024
    $region33: #{tpu_custom_call.1} parent=1 // pred_fallthru
      _
    %v62 = vld [vmem:[#allocation2] sm:$0xf]
    %v63 = vld [vmem:[#allocation2 + $0x4] sm:$0xf]
    %v64 = vld [vmem:[#allocation2 + $0x8] sm:$0xf]
    %v65 = vld [vmem:[#allocation2 + $0xc] sm:$0xf]
    %v66 = vld [vmem:[#allocation2 + $0x10] sm:$0xf]
    %v67 = vld [vmem:[#allocation2 + $0x14] sm:$0xf]
    %v68 = vld [vmem:[#allocation2 + $0x18] sm:$0xf]
    %v69 = vld [vmem:[#allocation2 + $0x1c] sm:$0xf]
    %v70 = vld [vmem:[#allocation2 + $0x20] sm:$0xf]
    %v71 = vld [vmem:[#allocation2 + $0x24] sm:$0xf]
    %v72 = vld [vmem:[#allocation2 + $0x28] sm:$0xf]
    %v73 = vld [vmem:[#allocation2 + $0x2c] sm:$0xf]
    %v74 = vld [vmem:[#allocation2 + $0x30] sm:$0xf]
    %v75 = vld [vmem:[#allocation2 + $0x34] sm:$0xf]
    %v76 = vld [vmem:[#allocation2 + $0x38] sm:$0xf]
    %v77 = vld [vmem:[#allocation2 + $0x3c] sm:$0xf]
    %v78 = vld [vmem:[#allocation2 + $0x40] sm:$0xf]
    %v79 = vld [vmem:[#allocation2 + $0x44] sm:$0xf]
    %v80 = vld [vmem:[#allocation2 + $0x48] sm:$0xf]
    %v81 = vld [vmem:[#allocation2 + $0x4c] sm:$0xf]
    %v82 = vld [vmem:[#allocation2 + $0x50] sm:$0xf]
    %v83 = vld [vmem:[#allocation2 + $0x54] sm:$0xf]
    %v84 = vld [vmem:[#allocation2 + $0x58] sm:$0xf]
    %v85 = vld [vmem:[#allocation2 + $0x5c] sm:$0xf]
    %v86 = vld [vmem:[#allocation2 + $0x60] sm:$0xf]
    %v87 = vld [vmem:[#allocation2 + $0x64] sm:$0xf]
    %v88 = vld [vmem:[#allocation2 + $0x68] sm:$0xf]
    %v89 = vld [vmem:[#allocation2 + $0x6c] sm:$0xf]
    %v90 = vld [vmem:[#allocation2 + $0x70] sm:$0xf]
    %v91 = vld [vmem:[#allocation2 + $0x74] sm:$0xf]
    %v92 = vld [vmem:[#allocation2 + $0x78] sm:$0xf]
    %v93 = vld [vmem:[#allocation2 + $0x7c] sm:$0xf]
    %v94 = vld [vmem:[#allocation6] sm:$0xf]
    %v95 = vld [vmem:[#allocation6 + $0x4] sm:$0xf]
    %v96 = vld [vmem:[#allocation6 + $0x8] sm:$0xf]
    %v97 = vld [vmem:[#allocation6 + $0xc] sm:$0xf]
    %v98 = vld [vmem:[#allocation6 + $0x10] sm:$0xf]
    %v99 = vld [vmem:[#allocation6 + $0x14] sm:$0xf]
    %v100 = vld [vmem:[#allocation6 + $0x18] sm:$0xf]
    %v101 = vld [vmem:[#allocation6 + $0x1c] sm:$0xf]
    %v102 = vld [vmem:[#allocation6 + $0x20] sm:$0xf]
    %v103 = vld [vmem:[#allocation6 + $0x24] sm:$0xf]
    %v104 = vld [vmem:[#allocation6 + $0x28] sm:$0xf]
    %v105 = vld [vmem:[#allocation6 + $0x2c] sm:$0xf]
    %v106 = vld [vmem:[#allocation6 + $0x30] sm:$0xf]
    %v107 = vld [vmem:[#allocation6 + $0x34] sm:$0xf]
    %v108 = vld [vmem:[#allocation6 + $0x38] sm:$0xf]
    %v109 = vld [vmem:[#allocation6 + $0x3c] sm:$0xf]
    %v110 = vld [vmem:[%s3] sm:$0x1]
    %v112 = vlaneseq
    %v113 = vshrl.u32 %v112, 7
    %v114 = vsub.s32 0, %v113
    %v115 = vrot.slane %v110, %v114
    %v149 = vunpack.c.l.b16 %v62
    %v150 = vunpack.c.l.b16 %v63
    %v151 = vunpack.c.l.b16 %v64
    %v152 = vunpack.c.l.b16 %v65
    %v153 = vunpack.c.l.b16 %v66
    %v154 = vunpack.c.l.b16 %v67
    %v155 = vunpack.c.l.b16 %v68
    %v156 = vunpack.c.l.b16 %v69
    %v157 = vunpack.c.l.b16 %v70
    %v158 = vunpack.c.l.b16 %v71
    %v159 = vunpack.c.l.b16 %v72
    %v160 = vunpack.c.l.b16 %v73
    %v161 = vunpack.c.l.b16 %v74
    %v162 = vunpack.c.l.b16 %v75
    %v163 = vunpack.c.l.b16 %v76
    %v164 = vunpack.c.l.b16 %v77
    %v165 = vunpack.c.l.b16 %v78
    %v166 = vunpack.c.l.b16 %v79
    %v167 = vunpack.c.l.b16 %v80
    %v168 = vunpack.c.l.b16 %v81
    %v169 = vunpack.c.l.b16 %v82
    %v170 = vunpack.c.l.b16 %v83
    %v171 = vunpack.c.l.b16 %v84
    %v172 = vunpack.c.l.b16 %v85
    %v173 = vunpack.c.l.b16 %v86
    %v174 = vunpack.c.l.b16 %v87
    %v175 = vunpack.c.l.b16 %v88
    %v176 = vunpack.c.l.b16 %v89
    %v177 = vunpack.c.l.b16 %v90
    %v178 = vunpack.c.l.b16 %v91
    %v179 = vunpack.c.l.b16 %v92
    %v180 = vunpack.c.l.b16 %v93
    %v181 = vpack.c.b16 %v150, %v149
    %v182 = vpack.c.b16 %v152, %v151
    %v183 = vpack.c.b16 %v154, %v153
    %v184 = vpack.c.b16 %v156, %v155
    %v185 = vpack.c.b16 %v158, %v157
    %v186 = vpack.c.b16 %v160, %v159
    %v187 = vpack.c.b16 %v162, %v161
    %v188 = vpack.c.b16 %v164, %v163
    %v189 = vpack.c.b16 %v166, %v165
    %v190 = vpack.c.b16 %v168, %v167
    %v191 = vpack.c.b16 %v170, %v169
    %v192 = vpack.c.b16 %v172, %v171
    %v193 = vpack.c.b16 %v174, %v173
    %v194 = vpack.c.b16 %v176, %v175
    %v195 = vpack.c.b16 %v178, %v177
    %v196 = vpack.c.b16 %v180, %v179
    %v229 = vunpack.c.l.b16 %v94
    %v230 = vunpack.c.l.b16 %v95
    %v231 = vunpack.c.l.b16 %v96
    %v232 = vunpack.c.l.b16 %v97
    %v233 = vunpack.c.l.b16 %v98
    %v234 = vunpack.c.l.b16 %v99
    %v235 = vunpack.c.l.b16 %v100
    %v236 = vunpack.c.l.b16 %v101
    %v237 = vunpack.c.l.b16 %v102
    %v238 = vunpack.c.l.b16 %v103
    %v239 = vunpack.c.l.b16 %v104
    %v240 = vunpack.c.l.b16 %v105
    %v241 = vunpack.c.l.b16 %v106
    %v242 = vunpack.c.l.b16 %v107
    %v243 = vunpack.c.l.b16 %v108
    %v244 = vunpack.c.l.b16 %v109
    %v245 = vpack.c.b16 %v230, %v229
    %v246 = vpack.c.b16 %v232, %v231
    %v247 = vpack.c.b16 %v234, %v233
    %v248 = vpack.c.b16 %v236, %v235
    %v249 = vpack.c.b16 %v238, %v237
    %v250 = vpack.c.b16 %v240, %v239
    %v251 = vpack.c.b16 %v242, %v241
    %v252 = vpack.c.b16 %v244, %v243
    %261 = vmatprep.subr.bf16.mxu0 0
    %262 = vmatpush1.bf16.msra.mxu0 %v245
    %263 = vmatprep.subr.bf16.mxu0 0
    %264 = vmatpush1.bf16.msra.mxu0 %v246
    %265 = vmatprep.subr.bf16.mxu0 0
    %266 = vmatpush1.bf16.msra.mxu0 %v247
    %267 = vmatprep.subr.bf16.mxu0 0
    %268 = vmatpush1.bf16.msra.mxu0 %v248
    %269 = vmatprep.subr.bf16.mxu0 0
    %270 = vmatpush1.bf16.msra.mxu0 %v249
    %271 = vmatprep.subr.bf16.mxu0 0
    %272 = vmatpush1.bf16.msra.mxu0 %v250
    %273 = vmatprep.subr.bf16.mxu0 0
    %274 = vmatpush1.bf16.msra.mxu0 %v251
    %275 = vmatprep.subr.bf16.mxu0 0
    %276 = vmatpush1.bf16.msra.mxu0 %v252
    %277 = vmatprep.subr.bf16.mxu0 0
    %278 = vmatpush1.bf16.msra.mxu0 0
    %279 = vmatprep.subr.bf16.mxu0 0
    %280 = vmatpush1.bf16.msra.mxu0 0
    %281 = vmatprep.subr.bf16.mxu0 0
    %282 = vmatpush1.bf16.msra.mxu0 0
    %283 = vmatprep.subr.bf16.mxu0 0
    %284 = vmatpush1.bf16.msra.mxu0 0
    %285 = vmatprep.subr.bf16.mxu0 0
    %286 = vmatpush1.bf16.msra.mxu0 0
    %287 = vmatprep.subr.bf16.mxu0 0
    %288 = vmatpush1.bf16.msra.mxu0 0
    %289 = vmatprep.subr.bf16.mxu0 0
    %290 = vmatpush1.bf16.msra.mxu0 0
    %291 = vmatprep.subr.bf16.mxu0 0
    %292 = vmatpush1.bf16.msra.mxu0 0
    %293 = vmatprep.mubr.bf16.mxu0 0
    %294 = vmatmul.mubr.bf16.gmra.mrb[0].mxu0 %v181
    %v295 = vpop.f32.mrb[0].mxu0
    %v296 = vadd.f32 %v115, %v295
    %v297 = vpop.f32.mrb[0].mxu0
    %v298 = vpop.f32.mrb[0].mxu0
    %v299 = vadd.f32 %v115, %v298
    %v300 = vpop.f32.mrb[0].mxu0
    %301 = vmatprep.mubr.bf16.mxu0 0
    %302 = vmatmul.mubr.bf16.gmra.mrb[0].mxu0 %v182
    %v303 = vpop.f32.mrb[0].mxu0
    %v304 = vadd.f32 %v115, %v303
    %v305 = vpop.f32.mrb[0].mxu0
    %v306 = vpop.f32.mrb[0].mxu0
    %v307 = vadd.f32 %v115, %v306
    %v308 = vpop.f32.mrb[0].mxu0
    %309 = vmatprep.mubr.bf16.mxu0 0
    %310 = vmatmul.mubr.bf16.gmra.mrb[0].mxu0 %v183
    %v311 = vpop.f32.mrb[0].mxu0
    %v312 = vadd.f32 %v115, %v311
    %v313 = vpop.f32.mrb[0].mxu0
    %v314 = vpop.f32.mrb[0].mxu0
    %v315 = vadd.f32 %v115, %v314
    %v316 = vpop.f32.mrb[0].mxu0
    %317 = vmatprep.mubr.bf16.mxu0 0
    %318 = vmatmul.mubr.bf16.gmra.mrb[0].mxu0 %v184
    %v319 = vpop.f32.mrb[0].mxu0
    %v320 = vadd.f32 %v115, %v319
    %v321 = vpop.f32.mrb[0].mxu0
    %v322 = vpop.f32.mrb[0].mxu0
    %v323 = vadd.f32 %v115, %v322
    %v324 = vpop.f32.mrb[0].mxu0
    %325 = vmatprep.mubr.bf16.mxu0 0
    %326 = vmatmul.mubr.bf16.gmra.mrb[0].mxu0 %v185
    %v327 = vpop.f32.mrb[0].mxu0
    %v328 = vadd.f32 %v115, %v327
    %v329 = vpop.f32.mrb[0].mxu0
    %v330 = vpop.f32.mrb[0].mxu0
    %v331 = vadd.f32 %v115, %v330
    %v332 = vpop.f32.mrb[0].mxu0
    %333 = vmatprep.mubr.bf16.mxu0 0
    %334 = vmatmul.mubr.bf16.gmra.mrb[0].mxu0 %v186
    %v335 = vpop.f32.mrb[0].mxu0
    %v336 = vadd.f32 %v115, %v335
    %v337 = vpop.f32.mrb[0].mxu0
    %v338 = vpop.f32.mrb[0].mxu0
    %v339 = vadd.f32 %v115, %v338
    %v340 = vpop.f32.mrb[0].mxu0
    %341 = vmatprep.mubr.bf16.mxu0 0
    %342 = vmatmul.mubr.bf16.gmra.mrb[0].mxu0 %v187
    %v343 = vpop.f32.mrb[0].mxu0
    %v344 = vadd.f32 %v115, %v343
    %v345 = vpop.f32.mrb[0].mxu0
    %v346 = vpop.f32.mrb[0].mxu0
    %v347 = vadd.f32 %v115, %v346
    %v348 = vpop.f32.mrb[0].mxu0
    %349 = vmatprep.mubr.bf16.mxu0 0
    %350 = vmatmul.mubr.bf16.gmra.mrb[0].mxu0 %v188
    %v351 = vpop.f32.mrb[0].mxu0
    %v352 = vadd.f32 %v115, %v351
    %v353 = vpop.f32.mrb[0].mxu0
    %v354 = vpop.f32.mrb[0].mxu0
    %v355 = vadd.f32 %v115, %v354
    %v356 = vpop.f32.mrb[0].mxu0
    %357 = vmatprep.mubr.bf16.mxu0 0
    %358 = vmatmul.mubr.bf16.gmra.mrb[0].mxu0 %v189
    %v359 = vpop.f32.mrb[0].mxu0
    %v360 = vadd.f32 %v115, %v359
    %v361 = vpop.f32.mrb[0].mxu0
    %v362 = vpop.f32.mrb[0].mxu0
    %v363 = vadd.f32 %v115, %v362
    %v364 = vpop.f32.mrb[0].mxu0
    %365 = vmatprep.mubr.bf16.mxu0 0
    %366 = vmatmul.mubr.bf16.gmra.mrb[0].mxu0 %v190
    %v367 = vpop.f32.mrb[0].mxu0
    %v368 = vadd.f32 %v115, %v367
    %v369 = vpop.f32.mrb[0].mxu0
    %v370 = vpop.f32.mrb[0].mxu0
    %v371 = vadd.f32 %v115, %v370
    %v372 = vpop.f32.mrb[0].mxu0
    %373 = vmatprep.mubr.bf16.mxu0 0
    %374 = vmatmul.mubr.bf16.gmra.mrb[0].mxu0 %v191
    %v375 = vpop.f32.mrb[0].mxu0
    %v376 = vadd.f32 %v115, %v375
    %v377 = vpop.f32.mrb[0].mxu0
    %v378 = vpop.f32.mrb[0].mxu0
    %v379 = vadd.f32 %v115, %v378
    %v380 = vpop.f32.mrb[0].mxu0
    %381 = vmatprep.mubr.bf16.mxu0 0
    %382 = vmatmul.mubr.bf16.gmra.mrb[0].mxu0 %v192
    %v383 = vpop.f32.mrb[0].mxu0
    %v384 = vadd.f32 %v115, %v383
    %v385 = vpop.f32.mrb[0].mxu0
    %v386 = vpop.f32.mrb[0].mxu0
    %v387 = vadd.f32 %v115, %v386
    %v388 = vpop.f32.mrb[0].mxu0
    %389 = vmatprep.mubr.bf16.mxu0 0
    %390 = vmatmul.mubr.bf16.gmra.mrb[0].mxu0 %v193
    %v391 = vpop.f32.mrb[0].mxu0
    %v392 = vadd.f32 %v115, %v391
    %v393 = vpop.f32.mrb[0].mxu0
    %v394 = vpop.f32.mrb[0].mxu0
    %v395 = vadd.f32 %v115, %v394
    %v396 = vpop.f32.mrb[0].mxu0
    %397 = vmatprep.mubr.bf16.mxu0 0
    %398 = vmatmul.mubr.bf16.gmra.mrb[0].mxu0 %v194
    %v399 = vpop.f32.mrb[0].mxu0
    %v400 = vadd.f32 %v115, %v399
    %v401 = vpop.f32.mrb[0].mxu0
    %v402 = vpop.f32.mrb[0].mxu0
    %v403 = vadd.f32 %v115, %v402
    %v404 = vpop.f32.mrb[0].mxu0
    %405 = vmatprep.mubr.bf16.mxu0 0
    %406 = vmatmul.mubr.bf16.gmra.mrb[0].mxu0 %v195
    %v407 = vpop.f32.mrb[0].mxu0
    %v408 = vadd.f32 %v115, %v407
    %v409 = vpop.f32.mrb[0].mxu0
    %v410 = vpop.f32.mrb[0].mxu0
    %v411 = vadd.f32 %v115, %v410
    %v412 = vpop.f32.mrb[0].mxu0
    %413 = vmatprep.mubr.bf16.mxu0 0
    %414 = vmatmul.mubr.bf16.gmra.mrb[0].mxu0 %v196
    %v415 = vpop.f32.mrb[0].mxu0
    %v416 = vadd.f32 %v115, %v415
    %v417 = vpop.f32.mrb[0].mxu0
    %v418 = vpop.f32.mrb[0].mxu0
    %v419 = vadd.f32 %v115, %v418
    %v420 = vpop.f32.mrb[0].mxu0
    %421 = vdwg.mxu0
    %v422 = vtanh.pop %v296
    %v423 = vtanh.pop %v299
    %v424 = vtanh.pop %v304
    %v425 = vtanh.pop %v307
    %v426 = vtanh.pop %v312
    %v427 = vtanh.pop %v315
    %v428 = vtanh.pop %v320
    %v429 = vtanh.pop %v323
    %v430 = vtanh.pop %v328
    %v431 = vtanh.pop %v331
    %v432 = vtanh.pop %v336
    %v433 = vtanh.pop %v339
    %v434 = vtanh.pop %v344
    %v435 = vtanh.pop %v347
    %v436 = vtanh.pop %v352
    %v437 = vtanh.pop %v355
    %v438 = vtanh.pop %v360
    %v439 = vtanh.pop %v363
    %v440 = vtanh.pop %v368
    %v441 = vtanh.pop %v371
    %v442 = vtanh.pop %v376
    %v443 = vtanh.pop %v379
    %v444 = vtanh.pop %v384
    %v445 = vtanh.pop %v387
    %v446 = vtanh.pop %v392
    %v447 = vtanh.pop %v395
    %v448 = vtanh.pop %v400
    %v449 = vtanh.pop %v403
    %v450 = vtanh.pop %v408
    %v451 = vtanh.pop %v411
    %v452 = vtanh.pop %v416
    %v453 = vtanh.pop %v419
    %v454 = vld [vmem:[%s4] sm:$0x1]
    %v456 = vlaneseq
    %v457 = vshrl.u32 %v456, 7
    %v458 = vsub.s32 0, %v457
    %v459 = vrot.slane %v454, %v458
    %v461 = vmul.f32 %v422, %v459
    %v462 = vmul.f32 %v423, %v459
    %v463 = vmul.f32 %v424, %v459
    %v464 = vmul.f32 %v425, %v459
    %v465 = vmul.f32 %v426, %v459
    %v466 = vmul.f32 %v427, %v459
    %v467 = vmul.f32 %v428, %v459
    %v468 = vmul.f32 %v429, %v459
    %v469 = vmul.f32 %v430, %v459
    %v470 = vmul.f32 %v431, %v459
    %v471 = vmul.f32 %v432, %v459
    %v472 = vmul.f32 %v433, %v459
    %v473 = vmul.f32 %v434, %v459
    %v474 = vmul.f32 %v435, %v459
    %v475 = vmul.f32 %v436, %v459
    %v476 = vmul.f32 %v437, %v459
    %v477 = vmul.f32 %v438, %v459
    %v478 = vmul.f32 %v439, %v459
    %v479 = vmul.f32 %v440, %v459
    %v480 = vmul.f32 %v441, %v459
    %v481 = vmul.f32 %v442, %v459
    %v482 = vmul.f32 %v443, %v459
    %v483 = vmul.f32 %v444, %v459
    %v484 = vmul.f32 %v445, %v459
    %v485 = vmul.f32 %v446, %v459
    %v486 = vmul.f32 %v447, %v459
    %v487 = vmul.f32 %v448, %v459
    %v488 = vmul.f32 %v449, %v459
    %v489 = vmul.f32 %v450, %v459
    %v490 = vmul.f32 %v451, %v459
    %v491 = vmul.f32 %v452, %v459
    %v492 = vmul.f32 %v453, %v459
    %493 = vadd.xlane.f32.xlu0 %v461
    %v494 = vpop.xlane.xlu0 %493
    %495 = vadd.xlane.f32.xlu0 %v462
    %v496 = vpop.xlane.xlu0 %495
    %497 = vadd.xlane.f32.xlu0 %v463
    %v498 = vpop.xlane.xlu0 %497
    %499 = vadd.xlane.f32.xlu0 %v464
    %v500 = vpop.xlane.xlu0 %499
    %501 = vadd.xlane.f32.xlu0 %v465
    %v502 = vpop.xlane.xlu0 %501
    %503 = vadd.xlane.f32.xlu0 %v466
    %v504 = vpop.xlane.xlu0 %503
    %505 = vadd.xlane.f32.xlu0 %v467
    %v506 = vpop.xlane.xlu0 %505
    %507 = vadd.xlane.f32.xlu0 %v468
    %v508 = vpop.xlane.xlu0 %507
    %509 = vadd.xlane.f32.xlu0 %v469
    %v510 = vpop.xlane.xlu0 %509
    %511 = vadd.xlane.f32.xlu0 %v470
    %v512 = vpop.xlane.xlu0 %511
    %513 = vadd.xlane.f32.xlu0 %v471
    %v514 = vpop.xlane.xlu0 %513
    %515 = vadd.xlane.f32.xlu0 %v472
    %v516 = vpop.xlane.xlu0 %515
    %517 = vadd.xlane.f32.xlu0 %v473
    %v518 = vpop.xlane.xlu0 %517
    %519 = vadd.xlane.f32.xlu0 %v474
    %v520 = vpop.xlane.xlu0 %519
    %521 = vadd.xlane.f32.xlu0 %v475
    %v522 = vpop.xlane.xlu0 %521
    %523 = vadd.xlane.f32.xlu0 %v476
    %v524 = vpop.xlane.xlu0 %523
    %525 = vadd.xlane.f32.xlu0 %v477
    %v526 = vpop.xlane.xlu0 %525
    %527 = vadd.xlane.f32.xlu0 %v478
    %v528 = vpop.xlane.xlu0 %527
    %529 = vadd.xlane.f32.xlu0 %v479
    %v530 = vpop.xlane.xlu0 %529
    %531 = vadd.xlane.f32.xlu0 %v480
    %v532 = vpop.xlane.xlu0 %531
    %533 = vadd.xlane.f32.xlu0 %v481
    %v534 = vpop.xlane.xlu0 %533
    %535 = vadd.xlane.f32.xlu0 %v482
    %v536 = vpop.xlane.xlu0 %535
    %537 = vadd.xlane.f32.xlu0 %v483
    %v538 = vpop.xlane.xlu0 %537
    %539 = vadd.xlane.f32.xlu0 %v484
    %v540 = vpop.xlane.xlu0 %539
    %541 = vadd.xlane.f32.xlu0 %v485
    %v542 = vpop.xlane.xlu0 %541
    %543 = vadd.xlane.f32.xlu0 %v486
    %v544 = vpop.xlane.xlu0 %543
    %545 = vadd.xlane.f32.xlu0 %v487
    %v546 = vpop.xlane.xlu0 %545
    %547 = vadd.xlane.f32.xlu0 %v488
    %v548 = vpop.xlane.xlu0 %547
    %549 = vadd.xlane.f32.xlu0 %v489
    %v550 = vpop.xlane.xlu0 %549
    %551 = vadd.xlane.f32.xlu0 %v490
    %v552 = vpop.xlane.xlu0 %551
    %553 = vadd.xlane.f32.xlu0 %v491
    %v554 = vpop.xlane.xlu0 %553
    %555 = vadd.xlane.f32.xlu0 %v492
    %v556 = vpop.xlane.xlu0 %555
    %v557 = vlaneseq
    %v558 = vand.u32 %v557, 127
    %v559 = vld [vmem:[#allocation4] sm:$0xff]
    %v560 = vld [vmem:[#allocation4 + $0x8] sm:$0xff]
    %vm561 = vcmp.eq.s32.totalorder %v559, 1
    %vm562 = vcmp.eq.s32.totalorder %v560, 1
    %v563 = vsel %vm561, %v558, 16
    %v564 = vsel %vm562, %v558, 16
    %vm565 = vcmask 130048
    %v566 = vsel %vm565, %v563, 2147483647
    %v567 = vand.u32 %v566, 65535
    %v568 = vshra.s32 %v566, 16
    %v569 = vcvt.s32.f32 %v567
    %v570 = vcvt.s32.f32 %v568
    %571 = vmin.xlane.f32.xlu0 %v570
    %v572 = vpop.xlane.xlu0 %571
    %vm573 = vcmp.eq.f32.partialorder %v570, %v572
    %v574 = vsel %vm573, %v569, inf
    %575 = vmin.xlane.f32.xlu0 %v574
    %v576 = vpop.xlane.xlu0 %575
    %v577 = vcvt.f32.s32 %v576
    %v578 = vcvt.f32.s32 %v572
    %v579 = vshll.u32 %v578, 16
    %v580 = vadd.s32 %v579, %v577
    %v581 = vsel %vm565, %v564, 2147483647
    %v582 = vand.u32 %v581, 65535
    %v583 = vshra.s32 %v581, 16
    %v584 = vcvt.s32.f32 %v582
    %v585 = vcvt.s32.f32 %v583
    %586 = vmin.xlane.f32.xlu0 %v585
    %v587 = vpop.xlane.xlu0 %586
    %vm588 = vcmp.eq.f32.partialorder %v585, %v587
    %v589 = vsel %vm588, %v584, inf
    %590 = vmin.xlane.f32.xlu0 %v589
    %v591 = vpop.xlane.xlu0 %590
    %v592 = vcvt.f32.s32 %v591
    %v593 = vcvt.f32.s32 %v587
    %v594 = vshll.u32 %v593, 16
    %v595 = vadd.s32 %v594, %v592
    %vm596 = vcmp.eq.s32.totalorder %v558, %v580
    %vm597 = vcmp.eq.s32.totalorder %v558, %v595
    %vm598 = vcmp.lt.s32.totalorder %v580, 16
    %vm599 = vcmp.lt.s32.totalorder %v595, 16
    %v600 = vsel %vm598, 1, 0
    %v601 = vsel %vm599, 1, 0
    %vm602 = vcmp.eq.s32.totalorder %v600, 1
    %vm603 = vcmp.eq.s32.totalorder %v601, 1
    %vm604 = vmand %vm596, %vm602
    %vm605 = vmand %vm597, %vm603
    %v606 = vsel %vm604, 1, 0
    %v607 = vsel %vm605, 1, 0
    %v608 = vcvt.s32.f32 %v606
    %v609 = vcvt.s32.f32 %v607
    %v642 = vlaneseq
    %v643 = vshrl.u32 %v642, 7
    %v644 = vsub.s32 %v558, %v643
    %v645 = vrot.slane %v494, %v644
    %v646 = vadd.s32 %v558, 4294967288
    %v647 = vlaneseq
    %v648 = vshrl.u32 %v647, 7
    %v649 = vsub.s32 %v646, %v648
    %v650 = vrot.slane %v496, %v649
    %vm651 = vcmask 130112
    %v652 = vsel %vm651, %v650, %v645
    %v653 = vlaneseq
    %v654 = vshrl.u32 %v653, 7
    %v655 = vsub.s32 %v558, %v654
    %v656 = vrot.slane %v498, %v655
    %v657 = vlaneseq
    %v658 = vshrl.u32 %v657, 7
    %v659 = vsub.s32 %v646, %v658
    %v660 = vrot.slane %v500, %v659
    %v661 = vsel %vm651, %v660, %v656
    %v662 = vlaneseq
    %v663 = vshrl.u32 %v662, 7
    %v664 = vsub.s32 %v558, %v663
    %v665 = vrot.slane %v502, %v664
    %v666 = vlaneseq
    %v667 = vshrl.u32 %v666, 7
    %v668 = vsub.s32 %v646, %v667
    %v669 = vrot.slane %v504, %v668
    %v670 = vsel %vm651, %v669, %v665
    %v671 = vlaneseq
    %v672 = vshrl.u32 %v671, 7
    %v673 = vsub.s32 %v558, %v672
    %v674 = vrot.slane %v506, %v673
    %v675 = vlaneseq
    %v676 = vshrl.u32 %v675, 7
    %v677 = vsub.s32 %v646, %v676
    %v678 = vrot.slane %v508, %v677
    %v679 = vsel %vm651, %v678, %v674
    %v680 = vlaneseq
    %v681 = vshrl.u32 %v680, 7
    %v682 = vsub.s32 %v558, %v681
    %v683 = vrot.slane %v510, %v682
    %v684 = vlaneseq
    %v685 = vshrl.u32 %v684, 7
    %v686 = vsub.s32 %v646, %v685
    %v687 = vrot.slane %v512, %v686
    %v688 = vsel %vm651, %v687, %v683
    %v689 = vlaneseq
    %v690 = vshrl.u32 %v689, 7
    %v691 = vsub.s32 %v558, %v690
    %v692 = vrot.slane %v514, %v691
    %v693 = vlaneseq
    %v694 = vshrl.u32 %v693, 7
    %v695 = vsub.s32 %v646, %v694
    %v696 = vrot.slane %v516, %v695
    %v697 = vsel %vm651, %v696, %v692
    %v698 = vlaneseq
    %v699 = vshrl.u32 %v698, 7
    %v700 = vsub.s32 %v558, %v699
    %v701 = vrot.slane %v518, %v700
    %v702 = vlaneseq
    %v703 = vshrl.u32 %v702, 7
    %v704 = vsub.s32 %v646, %v703
    %v705 = vrot.slane %v520, %v704
    %v706 = vsel %vm651, %v705, %v701
    %v707 = vlaneseq
    %v708 = vshrl.u32 %v707, 7
    %v709 = vsub.s32 %v558, %v708
    %v710 = vrot.slane %v522, %v709
    %v711 = vlaneseq
    %v712 = vshrl.u32 %v711, 7
    %v713 = vsub.s32 %v646, %v712
    %v714 = vrot.slane %v524, %v713
    %v715 = vsel %vm651, %v714, %v710
    %v716 = vlaneseq
    %v717 = vshrl.u32 %v716, 7
    %v718 = vsub.s32 %v558, %v717
    %v719 = vrot.slane %v526, %v718
    %v720 = vlaneseq
    %v721 = vshrl.u32 %v720, 7
    %v722 = vsub.s32 %v646, %v721
    %v723 = vrot.slane %v528, %v722
    %v724 = vsel %vm651, %v723, %v719
    %v725 = vlaneseq
    %v726 = vshrl.u32 %v725, 7
    %v727 = vsub.s32 %v558, %v726
    %v728 = vrot.slane %v530, %v727
    %v729 = vlaneseq
    %v730 = vshrl.u32 %v729, 7
    %v731 = vsub.s32 %v646, %v730
    %v732 = vrot.slane %v532, %v731
    %v733 = vsel %vm651, %v732, %v728
    %v734 = vlaneseq
    %v735 = vshrl.u32 %v734, 7
    %v736 = vsub.s32 %v558, %v735
    %v737 = vrot.slane %v534, %v736
    %v738 = vlaneseq
    %v739 = vshrl.u32 %v738, 7
    %v740 = vsub.s32 %v646, %v739
    %v741 = vrot.slane %v536, %v740
    %v742 = vsel %vm651, %v741, %v737
    %v743 = vlaneseq
    %v744 = vshrl.u32 %v743, 7
    %v745 = vsub.s32 %v558, %v744
    %v746 = vrot.slane %v538, %v745
    %v747 = vlaneseq
    %v748 = vshrl.u32 %v747, 7
    %v749 = vsub.s32 %v646, %v748
    %v750 = vrot.slane %v540, %v749
    %v751 = vsel %vm651, %v750, %v746
    %v752 = vlaneseq
    %v753 = vshrl.u32 %v752, 7
    %v754 = vsub.s32 %v558, %v753
    %v755 = vrot.slane %v542, %v754
    %v756 = vlaneseq
    %v757 = vshrl.u32 %v756, 7
    %v758 = vsub.s32 %v646, %v757
    %v759 = vrot.slane %v544, %v758
    %v760 = vsel %vm651, %v759, %v755
    %v761 = vlaneseq
    %v762 = vshrl.u32 %v761, 7
    %v763 = vsub.s32 %v558, %v762
    %v764 = vrot.slane %v546, %v763
    %v765 = vlaneseq
    %v766 = vshrl.u32 %v765, 7
    %v767 = vsub.s32 %v646, %v766
    %v768 = vrot.slane %v548, %v767
    %v769 = vsel %vm651, %v768, %v764
    %v770 = vlaneseq
    %v771 = vshrl.u32 %v770, 7
    %v772 = vsub.s32 %v558, %v771
    %v773 = vrot.slane %v550, %v772
    %v774 = vlaneseq
    %v775 = vshrl.u32 %v774, 7
    %v776 = vsub.s32 %v646, %v775
    %v777 = vrot.slane %v552, %v776
    %v778 = vsel %vm651, %v777, %v773
    %v779 = vlaneseq
    %v780 = vshrl.u32 %v779, 7
    %v781 = vsub.s32 %v558, %v780
    %v782 = vrot.slane %v554, %v781
    %v783 = vlaneseq
    %v784 = vshrl.u32 %v783, 7
    %v785 = vsub.s32 %v646, %v784
    %v786 = vrot.slane %v556, %v785
    %v787 = vsel %vm651, %v786, %v782
    %vm788 = vcmask 1041409
    %v789 = vsel %vm788, %v661, %v652
    %vm790 = vcmask 1042434
    %v791 = vsel %vm790, %v670, %v789
    %vm792 = vcmask 1043459
    %v793 = vsel %vm792, %v679, %v791
    %vm794 = vcmask 1044484
    %v795 = vsel %vm794, %v688, %v793
    %vm796 = vcmask 1045509
    %v797 = vsel %vm796, %v697, %v795
    %vm798 = vcmask 1046534
    %v799 = vsel %vm798, %v706, %v797
    %vm800 = vcmask 1047559
    %v801 = vsel %vm800, %v715, %v799
    %v802 = vsel %vm788, %v733, %v724
    %v803 = vsel %vm790, %v742, %v802
    %v804 = vsel %vm792, %v751, %v803
    %v805 = vsel %vm794, %v760, %v804
    %v806 = vsel %vm796, %v769, %v805
    %v807 = vsel %vm798, %v778, %v806
    %v808 = vsel %vm800, %v787, %v807
    %v811 = vsel %vm565, %v801, -inf
    %812 = vmax.xlane.f32.xlu0 %v811
    %v813 = vpop.xlane.xlu0 %812
    %v814 = vsel %vm565, %v808, -inf
    %815 = vmax.xlane.f32.xlu0 %v814
    %v816 = vpop.xlane.xlu0 %815
    %v819 = vlaneseq
    %v820 = vshrl.u32 %v819, 7
    %v821 = vsub.s32 0, %v820
    %v822 = vrot.slane %v813, %v821
    %v823 = vlaneseq
    %v824 = vshrl.u32 %v823, 7
    %v825 = vsub.s32 1, %v824
    %v826 = vrot.slane %v813, %v825
    %v827 = vlaneseq
    %v828 = vshrl.u32 %v827, 7
    %v829 = vsub.s32 2, %v828
    %v830 = vrot.slane %v813, %v829
    %v831 = vlaneseq
    %v832 = vshrl.u32 %v831, 7
    %v833 = vsub.s32 3, %v832
    %v834 = vrot.slane %v813, %v833
    %v835 = vlaneseq
    %v836 = vshrl.u32 %v835, 7
    %v837 = vsub.s32 4, %v836
    %v838 = vrot.slane %v813, %v837
    %v839 = vlaneseq
    %v840 = vshrl.u32 %v839, 7
    %v841 = vsub.s32 5, %v840
    %v842 = vrot.slane %v813, %v841
    %v843 = vlaneseq
    %v844 = vshrl.u32 %v843, 7
    %v845 = vsub.s32 6, %v844
    %v846 = vrot.slane %v813, %v845
    %v847 = vlaneseq
    %v848 = vshrl.u32 %v847, 7
    %v849 = vsub.s32 7, %v848
    %v850 = vrot.slane %v813, %v849
    %v851 = vlaneseq
    %v852 = vshrl.u32 %v851, 7
    %v853 = vsub.s32 0, %v852
    %v854 = vrot.slane %v816, %v853
    %v855 = vlaneseq
    %v856 = vshrl.u32 %v855, 7
    %v857 = vsub.s32 1, %v856
    %v858 = vrot.slane %v816, %v857
    %v859 = vlaneseq
    %v860 = vshrl.u32 %v859, 7
    %v861 = vsub.s32 2, %v860
    %v862 = vrot.slane %v816, %v861
    %v863 = vlaneseq
    %v864 = vshrl.u32 %v863, 7
    %v865 = vsub.s32 3, %v864
    %v866 = vrot.slane %v816, %v865
    %v867 = vlaneseq
    %v868 = vshrl.u32 %v867, 7
    %v869 = vsub.s32 4, %v868
    %v870 = vrot.slane %v816, %v869
    %v871 = vlaneseq
    %v872 = vshrl.u32 %v871, 7
    %v873 = vsub.s32 5, %v872
    %v874 = vrot.slane %v816, %v873
    %v875 = vlaneseq
    %v876 = vshrl.u32 %v875, 7
    %v877 = vsub.s32 6, %v876
    %v878 = vrot.slane %v816, %v877
    %v879 = vlaneseq
    %v880 = vshrl.u32 %v879, 7
    %v881 = vsub.s32 7, %v880
    %v882 = vrot.slane %v816, %v881
    %v899 = vsub.f32 %v494, %v822
    %v900 = vsub.f32 %v496, %v822
    %v901 = vsub.f32 %v498, %v826
    %v902 = vsub.f32 %v500, %v826
    %v903 = vsub.f32 %v502, %v830
    %v904 = vsub.f32 %v504, %v830
    %v905 = vsub.f32 %v506, %v834
    %v906 = vsub.f32 %v508, %v834
    %v907 = vsub.f32 %v510, %v838
    %v908 = vsub.f32 %v512, %v838
    %v909 = vsub.f32 %v514, %v842
    %v910 = vsub.f32 %v516, %v842
    %v911 = vsub.f32 %v518, %v846
    %v912 = vsub.f32 %v520, %v846
    %v913 = vsub.f32 %v522, %v850
    %v914 = vsub.f32 %v524, %v850
    %v915 = vsub.f32 %v526, %v854
    %v916 = vsub.f32 %v528, %v854
    %v917 = vsub.f32 %v530, %v858
    %v918 = vsub.f32 %v532, %v858
    %v919 = vsub.f32 %v534, %v862
    %v920 = vsub.f32 %v536, %v862
    %v921 = vsub.f32 %v538, %v866
    %v922 = vsub.f32 %v540, %v866
    %v923 = vsub.f32 %v542, %v870
    %v924 = vsub.f32 %v544, %v870
    %v925 = vsub.f32 %v546, %v874
    %v926 = vsub.f32 %v548, %v874
    %v927 = vsub.f32 %v550, %v878
    %v928 = vsub.f32 %v552, %v878
    %v929 = vsub.f32 %v554, %v882
    %v930 = vsub.f32 %v556, %v882
    %v931 = vmul.f32 %v899, 1.442695
    %v932 = vpow.pop %v931
    %v933 = vmul.f32 %v900, 1.442695
    %v934 = vpow.pop %v933
    %v935 = vmul.f32 %v901, 1.442695
    %v936 = vpow.pop %v935
    %v937 = vmul.f32 %v902, 1.442695
    %v938 = vpow.pop %v937
    %v939 = vmul.f32 %v903, 1.442695
    %v940 = vpow.pop %v939
    %v941 = vmul.f32 %v904, 1.442695
    %v942 = vpow.pop %v941
    %v943 = vmul.f32 %v905, 1.442695
    %v944 = vpow.pop %v943
    %v945 = vmul.f32 %v906, 1.442695
    %v946 = vpow.pop %v945
    %v947 = vmul.f32 %v907, 1.442695
    %v948 = vpow.pop %v947
    %v949 = vmul.f32 %v908, 1.442695
    %v950 = vpow.pop %v949
    %v951 = vmul.f32 %v909, 1.442695
    %v952 = vpow.pop %v951
    %v953 = vmul.f32 %v910, 1.442695
    %v954 = vpow.pop %v953
    %v955 = vmul.f32 %v911, 1.442695
    %v956 = vpow.pop %v955
    %v957 = vmul.f32 %v912, 1.442695
    %v958 = vpow.pop %v957
    %v959 = vmul.f32 %v913, 1.442695
    %v960 = vpow.pop %v959
    %v961 = vmul.f32 %v914, 1.442695
    %v962 = vpow.pop %v961
    %v963 = vmul.f32 %v915, 1.442695
    %v964 = vpow.pop %v963
    %v965 = vmul.f32 %v916, 1.442695
    %v966 = vpow.pop %v965
    %v967 = vmul.f32 %v917, 1.442695
    %v968 = vpow.pop %v967
    %v969 = vmul.f32 %v918, 1.442695
    %v970 = vpow.pop %v969
    %v971 = vmul.f32 %v919, 1.442695
    %v972 = vpow.pop %v971
    %v973 = vmul.f32 %v920, 1.442695
    %v974 = vpow.pop %v973
    %v975 = vmul.f32 %v921, 1.442695
    %v976 = vpow.pop %v975
    %v977 = vmul.f32 %v922, 1.442695
    %v978 = vpow.pop %v977
    %v979 = vmul.f32 %v923, 1.442695
    %v980 = vpow.pop %v979
    %v981 = vmul.f32 %v924, 1.442695
    %v982 = vpow.pop %v981
    %v983 = vmul.f32 %v925, 1.442695
    %v984 = vpow.pop %v983
    %v985 = vmul.f32 %v926, 1.442695
    %v986 = vpow.pop %v985
    %v987 = vmul.f32 %v927, 1.442695
    %v988 = vpow.pop %v987
    %v989 = vmul.f32 %v928, 1.442695
    %v990 = vpow.pop %v989
    %v991 = vmul.f32 %v929, 1.442695
    %v992 = vpow.pop %v991
    %v993 = vmul.f32 %v930, 1.442695
    %v994 = vpow.pop %v993
    %1027 = vset.pattern.permute.xlu0 0
    %1028 = vperm.xlu0 %1027, %v932
    %v1029 = vpop.permute.xlu0 %1028
    %1030 = vset.pattern.permute.xlu0 0
    %1031 = vperm.xlu0 %1030, %v934
    %v1032 = vpop.permute.xlu0 %1031
    %1033 = vset.pattern.permute.xlu0 0
    %1034 = vperm.xlu0 %1033, %v936
    %v1035 = vpop.permute.xlu0 %1034
    %1036 = vset.pattern.permute.xlu0 0
    %1037 = vperm.xlu0 %1036, %v938
    %v1038 = vpop.permute.xlu0 %1037
    %1039 = vset.pattern.permute.xlu0 0
    %1040 = vperm.xlu0 %1039, %v940
    %v1041 = vpop.permute.xlu0 %1040
    %1042 = vset.pattern.permute.xlu0 0
    %1043 = vperm.xlu0 %1042, %v942
    %v1044 = vpop.permute.xlu0 %1043
    %1045 = vset.pattern.permute.xlu0 0
    %1046 = vperm.xlu0 %1045, %v944
    %v1047 = vpop.permute.xlu0 %1046
    %1048 = vset.pattern.permute.xlu0 0
    %1049 = vperm.xlu0 %1048, %v946
    %v1050 = vpop.permute.xlu0 %1049
    %1051 = vset.pattern.permute.xlu0 0
    %1052 = vperm.xlu0 %1051, %v948
    %v1053 = vpop.permute.xlu0 %1052
    %1054 = vset.pattern.permute.xlu0 0
    %1055 = vperm.xlu0 %1054, %v950
    %v1056 = vpop.permute.xlu0 %1055
    %1057 = vset.pattern.permute.xlu0 0
    %1058 = vperm.xlu0 %1057, %v952
    %v1059 = vpop.permute.xlu0 %1058
    %1060 = vset.pattern.permute.xlu0 0
    %1061 = vperm.xlu0 %1060, %v954
    %v1062 = vpop.permute.xlu0 %1061
    %1063 = vset.pattern.permute.xlu0 0
    %1064 = vperm.xlu0 %1063, %v956
    %v1065 = vpop.permute.xlu0 %1064
    %1066 = vset.pattern.permute.xlu0 0
    %1067 = vperm.xlu0 %1066, %v958
    %v1068 = vpop.permute.xlu0 %1067
    %1069 = vset.pattern.permute.xlu0 0
    %1070 = vperm.xlu0 %1069, %v960
    %v1071 = vpop.permute.xlu0 %1070
    %1072 = vset.pattern.permute.xlu0 0
    %1073 = vperm.xlu0 %1072, %v962
    %v1074 = vpop.permute.xlu0 %1073
    %1075 = vset.pattern.permute.xlu0 0
    %1076 = vperm.xlu0 %1075, %v964
    %v1077 = vpop.permute.xlu0 %1076
    %1078 = vset.pattern.permute.xlu0 0
    %1079 = vperm.xlu0 %1078, %v966
    %v1080 = vpop.permute.xlu0 %1079
    %1081 = vset.pattern.permute.xlu0 0
    %1082 = vperm.xlu0 %1081, %v968
    %v1083 = vpop.permute.xlu0 %1082
    %1084 = vset.pattern.permute.xlu0 0
    %1085 = vperm.xlu0 %1084, %v970
    %v1086 = vpop.permute.xlu0 %1085
    %1087 = vset.pattern.permute.xlu0 0
    %1088 = vperm.xlu0 %1087, %v972
    %v1089 = vpop.permute.xlu0 %1088
    %1090 = vset.pattern.permute.xlu0 0
    %1091 = vperm.xlu0 %1090, %v974
    %v1092 = vpop.permute.xlu0 %1091
    %1093 = vset.pattern.permute.xlu0 0
    %1094 = vperm.xlu0 %1093, %v976
    %v1095 = vpop.permute.xlu0 %1094
    %1096 = vset.pattern.permute.xlu0 0
    %1097 = vperm.xlu0 %1096, %v978
    %v1098 = vpop.permute.xlu0 %1097
    %1099 = vset.pattern.permute.xlu0 0
    %1100 = vperm.xlu0 %1099, %v980
    %v1101 = vpop.permute.xlu0 %1100
    %1102 = vset.pattern.permute.xlu0 0
    %1103 = vperm.xlu0 %1102, %v982
    %v1104 = vpop.permute.xlu0 %1103
    %1105 = vset.pattern.permute.xlu0 0
    %1106 = vperm.xlu0 %1105, %v984
    %v1107 = vpop.permute.xlu0 %1106
    %1108 = vset.pattern.permute.xlu0 0
    %1109 = vperm.xlu0 %1108, %v986
    %v1110 = vpop.permute.xlu0 %1109
    %1111 = vset.pattern.permute.xlu0 0
    %1112 = vperm.xlu0 %1111, %v988
    %v1113 = vpop.permute.xlu0 %1112
    %1114 = vset.pattern.permute.xlu0 0
    %1115 = vperm.xlu0 %1114, %v990
    %v1116 = vpop.permute.xlu0 %1115
    %1117 = vset.pattern.permute.xlu0 0
    %1118 = vperm.xlu0 %1117, %v992
    %v1119 = vpop.permute.xlu0 %1118
    %1120 = vset.pattern.permute.xlu0 0
    %1121 = vperm.xlu0 %1120, %v994
    %v1122 = vpop.permute.xlu0 %1121
    %v1123 = vlaneseq
    %v1124 = vshrl.u32 %v1123, 7
    %v1125 = vsub.s32 %v558, %v1124
    %v1126 = vrot.slane %v1029, %v1125
    %v1127 = vlaneseq
    %v1128 = vshrl.u32 %v1127, 7
    %v1129 = vsub.s32 %v646, %v1128
    %v1130 = vrot.slane %v1032, %v1129
    %v1131 = vsel %vm651, %v1130, %v1126
    %v1132 = vlaneseq
    %v1133 = vshrl.u32 %v1132, 7
    %v1134 = vsub.s32 %v558, %v1133
    %v1135 = vrot.slane %v1035, %v1134
    %v1136 = vlaneseq
    %v1137 = vshrl.u32 %v1136, 7
    %v1138 = vsub.s32 %v646, %v1137
    %v1139 = vrot.slane %v1038, %v1138
    %v1140 = vsel %vm651, %v1139, %v1135
    %v1141 = vlaneseq
    %v1142 = vshrl.u32 %v1141, 7
    %v1143 = vsub.s32 %v558, %v1142
    %v1144 = vrot.slane %v1041, %v1143
    %v1145 = vlaneseq
    %v1146 = vshrl.u32 %v1145, 7
    %v1147 = vsub.s32 %v646, %v1146
    %v1148 = vrot.slane %v1044, %v1147
    %v1149 = vsel %vm651, %v1148, %v1144
    %v1150 = vlaneseq
    %v1151 = vshrl.u32 %v1150, 7
    %v1152 = vsub.s32 %v558, %v1151
    %v1153 = vrot.slane %v1047, %v1152
    %v1154 = vlaneseq
    %v1155 = vshrl.u32 %v1154, 7
    %v1156 = vsub.s32 %v646, %v1155
    %v1157 = vrot.slane %v1050, %v1156
    %v1158 = vsel %vm651, %v1157, %v1153
    %v1159 = vlaneseq
    %v1160 = vshrl.u32 %v1159, 7
    %v1161 = vsub.s32 %v558, %v1160
    %v1162 = vrot.slane %v1053, %v1161
    %v1163 = vlaneseq
    %v1164 = vshrl.u32 %v1163, 7
    %v1165 = vsub.s32 %v646, %v1164
    %v1166 = vrot.slane %v1056, %v1165
    %v1167 = vsel %vm651, %v1166, %v1162
    %v1168 = vlaneseq
    %v1169 = vshrl.u32 %v1168, 7
    %v1170 = vsub.s32 %v558, %v1169
    %v1171 = vrot.slane %v1059, %v1170
    %v1172 = vlaneseq
    %v1173 = vshrl.u32 %v1172, 7
    %v1174 = vsub.s32 %v646, %v1173
    %v1175 = vrot.slane %v1062, %v1174
    %v1176 = vsel %vm651, %v1175, %v1171
    %v1177 = vlaneseq
    %v1178 = vshrl.u32 %v1177, 7
    %v1179 = vsub.s32 %v558, %v1178
    %v1180 = vrot.slane %v1065, %v1179
    %v1181 = vlaneseq
    %v1182 = vshrl.u32 %v1181, 7
    %v1183 = vsub.s32 %v646, %v1182
    %v1184 = vrot.slane %v1068, %v1183
    %v1185 = vsel %vm651, %v1184, %v1180
    %v1186 = vlaneseq
    %v1187 = vshrl.u32 %v1186, 7
    %v1188 = vsub.s32 %v558, %v1187
    %v1189 = vrot.slane %v1071, %v1188
    %v1190 = vlaneseq
    %v1191 = vshrl.u32 %v1190, 7
    %v1192 = vsub.s32 %v646, %v1191
    %v1193 = vrot.slane %v1074, %v1192
    %v1194 = vsel %vm651, %v1193, %v1189
    %v1195 = vlaneseq
    %v1196 = vshrl.u32 %v1195, 7
    %v1197 = vsub.s32 %v558, %v1196
    %v1198 = vrot.slane %v1077, %v1197
    %v1199 = vlaneseq
    %v1200 = vshrl.u32 %v1199, 7
    %v1201 = vsub.s32 %v646, %v1200
    %v1202 = vrot.slane %v1080, %v1201
    %v1203 = vsel %vm651, %v1202, %v1198
    %v1204 = vlaneseq
    %v1205 = vshrl.u32 %v1204, 7
    %v1206 = vsub.s32 %v558, %v1205
    %v1207 = vrot.slane %v1083, %v1206
    %v1208 = vlaneseq
    %v1209 = vshrl.u32 %v1208, 7
    %v1210 = vsub.s32 %v646, %v1209
    %v1211 = vrot.slane %v1086, %v1210
    %v1212 = vsel %vm651, %v1211, %v1207
    %v1213 = vlaneseq
    %v1214 = vshrl.u32 %v1213, 7
    %v1215 = vsub.s32 %v558, %v1214
    %v1216 = vrot.slane %v1089, %v1215
    %v1217 = vlaneseq
    %v1218 = vshrl.u32 %v1217, 7
    %v1219 = vsub.s32 %v646, %v1218
    %v1220 = vrot.slane %v1092, %v1219
    %v1221 = vsel %vm651, %v1220, %v1216
    %v1222 = vlaneseq
    %v1223 = vshrl.u32 %v1222, 7
    %v1224 = vsub.s32 %v558, %v1223
    %v1225 = vrot.slane %v1095, %v1224
    %v1226 = vlaneseq
    %v1227 = vshrl.u32 %v1226, 7
    %v1228 = vsub.s32 %v646, %v1227
    %v1229 = vrot.slane %v1098, %v1228
    %v1230 = vsel %vm651, %v1229, %v1225
    %v1231 = vlaneseq
    %v1232 = vshrl.u32 %v1231, 7
    %v1233 = vsub.s32 %v558, %v1232
    %v1234 = vrot.slane %v1101, %v1233
    %v1235 = vlaneseq
    %v1236 = vshrl.u32 %v1235, 7
    %v1237 = vsub.s32 %v646, %v1236
    %v1238 = vrot.slane %v1104, %v1237
    %v1239 = vsel %vm651, %v1238, %v1234
    %v1240 = vlaneseq
    %v1241 = vshrl.u32 %v1240, 7
    %v1242 = vsub.s32 %v558, %v1241
    %v1243 = vrot.slane %v1107, %v1242
    %v1244 = vlaneseq
    %v1245 = vshrl.u32 %v1244, 7
    %v1246 = vsub.s32 %v646, %v1245
    %v1247 = vrot.slane %v1110, %v1246
    %v1248 = vsel %vm651, %v1247, %v1243
    %v1249 = vlaneseq
    %v1250 = vshrl.u32 %v1249, 7
    %v1251 = vsub.s32 %v558, %v1250
    %v1252 = vrot.slane %v1113, %v1251
    %v1253 = vlaneseq
    %v1254 = vshrl.u32 %v1253, 7
    %v1255 = vsub.s32 %v646, %v1254
    %v1256 = vrot.slane %v1116, %v1255
    %v1257 = vsel %vm651, %v1256, %v1252
    %v1258 = vlaneseq
    %v1259 = vshrl.u32 %v1258, 7
    %v1260 = vsub.s32 %v558, %v1259
    %v1261 = vrot.slane %v1119, %v1260
    %v1262 = vlaneseq
    %v1263 = vshrl.u32 %v1262, 7
    %v1264 = vsub.s32 %v646, %v1263
    %v1265 = vrot.slane %v1122, %v1264
    %v1266 = vsel %vm651, %v1265, %v1261
    %v1267 = vsel %vm788, %v1140, %v1131
    %v1268 = vsel %vm790, %v1149, %v1267
    %v1269 = vsel %vm792, %v1158, %v1268
    %v1270 = vsel %vm794, %v1167, %v1269
    %v1271 = vsel %vm796, %v1176, %v1270
    %v1272 = vsel %vm798, %v1185, %v1271
    %v1273 = vsel %vm800, %v1194, %v1272
    %v1274 = vsel %vm788, %v1212, %v1203
    %v1275 = vsel %vm790, %v1221, %v1274
    %v1276 = vsel %vm792, %v1230, %v1275
    %v1277 = vsel %vm794, %v1239, %v1276
    %v1278 = vsel %vm796, %v1248, %v1277
    %v1279 = vsel %vm798, %v1257, %v1278
    %v1280 = vsel %vm800, %v1266, %v1279
    %v1283 = vsel %vm565, %v1273, 0.0
    %1284 = vadd.xlane.f32.xlu0 %v1283
    %v1285 = vpop.xlane.xlu0 %1284
    %v1286 = vsel %vm565, %v1280, 0.0
    %1287 = vadd.xlane.f32.xlu0 %v1286
    %v1288 = vpop.xlane.xlu0 %1287
    %v1289 = vlog2.pop %v1285
    %v1290 = vmul.f32 %v1289, 0.6931472
    %v1291 = vlog2.pop %v1288
    %v1292 = vmul.f32 %v1291, 0.6931472
    %v1295 = vlaneseq
    %v1296 = vshrl.u32 %v1295, 7
    %v1297 = vsub.s32 0, %v1296
    %v1298 = vrot.slane %v1290, %v1297
    %v1299 = vlaneseq
    %v1300 = vshrl.u32 %v1299, 7
    %v1301 = vsub.s32 1, %v1300
    %v1302 = vrot.slane %v1290, %v1301
    %v1303 = vlaneseq
    %v1304 = vshrl.u32 %v1303, 7
    %v1305 = vsub.s32 2, %v1304
    %v1306 = vrot.slane %v1290, %v1305
    %v1307 = vlaneseq
    %v1308 = vshrl.u32 %v1307, 7
    %v1309 = vsub.s32 3, %v1308
    %v1310 = vrot.slane %v1290, %v1309
    %v1311 = vlaneseq
    %v1312 = vshrl.u32 %v1311, 7
    %v1313 = vsub.s32 4, %v1312
    %v1314 = vrot.slane %v1290, %v1313
    %v1315 = vlaneseq
    %v1316 = vshrl.u32 %v1315, 7
    %v1317 = vsub.s32 5, %v1316
    %v1318 = vrot.slane %v1290, %v1317
    %v1319 = vlaneseq
    %v1320 = vshrl.u32 %v1319, 7
    %v1321 = vsub.s32 6, %v1320
    %v1322 = vrot.slane %v1290, %v1321
    %v1323 = vlaneseq
    %v1324 = vshrl.u32 %v1323, 7
    %v1325 = vsub.s32 7, %v1324
    %v1326 = vrot.slane %v1290, %v1325
    %v1327 = vlaneseq
    %v1328 = vshrl.u32 %v1327, 7
    %v1329 = vsub.s32 0, %v1328
    %v1330 = vrot.slane %v1292, %v1329
    %v1331 = vlaneseq
    %v1332 = vshrl.u32 %v1331, 7
    %v1333 = vsub.s32 1, %v1332
    %v1334 = vrot.slane %v1292, %v1333
    %v1335 = vlaneseq
    %v1336 = vshrl.u32 %v1335, 7
    %v1337 = vsub.s32 2, %v1336
    %v1338 = vrot.slane %v1292, %v1337
    %v1339 = vlaneseq
    %v1340 = vshrl.u32 %v1339, 7
    %v1341 = vsub.s32 3, %v1340
    %v1342 = vrot.slane %v1292, %v1341
    %v1343 = vlaneseq
    %v1344 = vshrl.u32 %v1343, 7
    %v1345 = vsub.s32 4, %v1344
    %v1346 = vrot.slane %v1292, %v1345
    %v1347 = vlaneseq
    %v1348 = vshrl.u32 %v1347, 7
    %v1349 = vsub.s32 5, %v1348
    %v1350 = vrot.slane %v1292, %v1349
    %v1351 = vlaneseq
    %v1352 = vshrl.u32 %v1351, 7
    %v1353 = vsub.s32 6, %v1352
    %v1354 = vrot.slane %v1292, %v1353
    %v1355 = vlaneseq
    %v1356 = vshrl.u32 %v1355, 7
    %v1357 = vsub.s32 7, %v1356
    %v1358 = vrot.slane %v1292, %v1357
    %v1375 = vsub.f32 %v899, %v1298
    %v1376 = vsub.f32 %v900, %v1298
    %v1377 = vsub.f32 %v901, %v1302
    %v1378 = vsub.f32 %v902, %v1302
    %v1379 = vsub.f32 %v903, %v1306
    %v1380 = vsub.f32 %v904, %v1306
    %v1381 = vsub.f32 %v905, %v1310
    %v1382 = vsub.f32 %v906, %v1310
    %v1383 = vsub.f32 %v907, %v1314
    %v1384 = vsub.f32 %v908, %v1314
    %v1385 = vsub.f32 %v909, %v1318
    %v1386 = vsub.f32 %v910, %v1318
    %v1387 = vsub.f32 %v911, %v1322
    %v1388 = vsub.f32 %v912, %v1322
    %v1389 = vsub.f32 %v913, %v1326
    %v1390 = vsub.f32 %v914, %v1326
    %v1391 = vsub.f32 %v915, %v1330
    %v1392 = vsub.f32 %v916, %v1330
    %v1393 = vsub.f32 %v917, %v1334
    %v1394 = vsub.f32 %v918, %v1334
    %v1395 = vsub.f32 %v919, %v1338
    %v1396 = vsub.f32 %v920, %v1338
    %v1397 = vsub.f32 %v921, %v1342
    %v1398 = vsub.f32 %v922, %v1342
    %v1399 = vsub.f32 %v923, %v1346
    %v1400 = vsub.f32 %v924, %v1346
    %v1401 = vsub.f32 %v925, %v1350
    %v1402 = vsub.f32 %v926, %v1350
    %v1403 = vsub.f32 %v927, %v1354
    %v1404 = vsub.f32 %v928, %v1354
    %v1405 = vsub.f32 %v929, %v1358
    %v1406 = vsub.f32 %v930, %v1358
    %1439 = vset.pattern.permute.xlu0 0
    %1440 = vperm.xlu0 %1439, %v1375
    %v1441 = vpop.permute.xlu0 %1440
    %1442 = vset.pattern.permute.xlu0 0
    %1443 = vperm.xlu0 %1442, %v1376
    %v1444 = vpop.permute.xlu0 %1443
    %1445 = vset.pattern.permute.xlu0 0
    %1446 = vperm.xlu0 %1445, %v1377
    %v1447 = vpop.permute.xlu0 %1446
    %1448 = vset.pattern.permute.xlu0 0
    %1449 = vperm.xlu0 %1448, %v1378
    %v1450 = vpop.permute.xlu0 %1449
    %1451 = vset.pattern.permute.xlu0 0
    %1452 = vperm.xlu0 %1451, %v1379
    %v1453 = vpop.permute.xlu0 %1452
    %1454 = vset.pattern.permute.xlu0 0
    %1455 = vperm.xlu0 %1454, %v1380
    %v1456 = vpop.permute.xlu0 %1455
    %1457 = vset.pattern.permute.xlu0 0
    %1458 = vperm.xlu0 %1457, %v1381
    %v1459 = vpop.permute.xlu0 %1458
    %1460 = vset.pattern.permute.xlu0 0
    %1461 = vperm.xlu0 %1460, %v1382
    %v1462 = vpop.permute.xlu0 %1461
    %1463 = vset.pattern.permute.xlu0 0
    %1464 = vperm.xlu0 %1463, %v1383
    %v1465 = vpop.permute.xlu0 %1464
    %1466 = vset.pattern.permute.xlu0 0
    %1467 = vperm.xlu0 %1466, %v1384
    %v1468 = vpop.permute.xlu0 %1467
    %1469 = vset.pattern.permute.xlu0 0
    %1470 = vperm.xlu0 %1469, %v1385
    %v1471 = vpop.permute.xlu0 %1470
    %1472 = vset.pattern.permute.xlu0 0
    %1473 = vperm.xlu0 %1472, %v1386
    %v1474 = vpop.permute.xlu0 %1473
    %1475 = vset.pattern.permute.xlu0 0
    %1476 = vperm.xlu0 %1475, %v1387
    %v1477 = vpop.permute.xlu0 %1476
    %1478 = vset.pattern.permute.xlu0 0
    %1479 = vperm.xlu0 %1478, %v1388
    %v1480 = vpop.permute.xlu0 %1479
    %1481 = vset.pattern.permute.xlu0 0
    %1482 = vperm.xlu0 %1481, %v1389
    %v1483 = vpop.permute.xlu0 %1482
    %1484 = vset.pattern.permute.xlu0 0
    %1485 = vperm.xlu0 %1484, %v1390
    %v1486 = vpop.permute.xlu0 %1485
    %1487 = vset.pattern.permute.xlu0 0
    %1488 = vperm.xlu0 %1487, %v1391
    %v1489 = vpop.permute.xlu0 %1488
    %1490 = vset.pattern.permute.xlu0 0
    %1491 = vperm.xlu0 %1490, %v1392
    %v1492 = vpop.permute.xlu0 %1491
    %1493 = vset.pattern.permute.xlu0 0
    %1494 = vperm.xlu0 %1493, %v1393
    %v1495 = vpop.permute.xlu0 %1494
    %1496 = vset.pattern.permute.xlu0 0
    %1497 = vperm.xlu0 %1496, %v1394
    %v1498 = vpop.permute.xlu0 %1497
    %1499 = vset.pattern.permute.xlu0 0
    %1500 = vperm.xlu0 %1499, %v1395
    %v1501 = vpop.permute.xlu0 %1500
    %1502 = vset.pattern.permute.xlu0 0
    %1503 = vperm.xlu0 %1502, %v1396
    %v1504 = vpop.permute.xlu0 %1503
    %1505 = vset.pattern.permute.xlu0 0
    %1506 = vperm.xlu0 %1505, %v1397
    %v1507 = vpop.permute.xlu0 %1506
    %1508 = vset.pattern.permute.xlu0 0
    %1509 = vperm.xlu0 %1508, %v1398
    %v1510 = vpop.permute.xlu0 %1509
    %1511 = vset.pattern.permute.xlu0 0
    %1512 = vperm.xlu0 %1511, %v1399
    %v1513 = vpop.permute.xlu0 %1512
    %1514 = vset.pattern.permute.xlu0 0
    %1515 = vperm.xlu0 %1514, %v1400
    %v1516 = vpop.permute.xlu0 %1515
    %1517 = vset.pattern.permute.xlu0 0
    %1518 = vperm.xlu0 %1517, %v1401
    %v1519 = vpop.permute.xlu0 %1518
    %1520 = vset.pattern.permute.xlu0 0
    %1521 = vperm.xlu0 %1520, %v1402
    %v1522 = vpop.permute.xlu0 %1521
    %1523 = vset.pattern.permute.xlu0 0
    %1524 = vperm.xlu0 %1523, %v1403
    %v1525 = vpop.permute.xlu0 %1524
    %1526 = vset.pattern.permute.xlu0 0
    %1527 = vperm.xlu0 %1526, %v1404
    %v1528 = vpop.permute.xlu0 %1527
    %1529 = vset.pattern.permute.xlu0 0
    %1530 = vperm.xlu0 %1529, %v1405
    %v1531 = vpop.permute.xlu0 %1530
    %1532 = vset.pattern.permute.xlu0 0
    %1533 = vperm.xlu0 %1532, %v1406
    %v1534 = vpop.permute.xlu0 %1533
    %v1535 = vlaneseq
    %v1536 = vshrl.u32 %v1535, 7
    %v1537 = vsub.s32 %v558, %v1536
    %v1538 = vrot.slane %v1441, %v1537
    %v1539 = vlaneseq
    %v1540 = vshrl.u32 %v1539, 7
    %v1541 = vsub.s32 %v646, %v1540
    %v1542 = vrot.slane %v1444, %v1541
    %v1543 = vsel %vm651, %v1542, %v1538
    %v1544 = vlaneseq
    %v1545 = vshrl.u32 %v1544, 7
    %v1546 = vsub.s32 %v558, %v1545
    %v1547 = vrot.slane %v1447, %v1546
    %v1548 = vlaneseq
    %v1549 = vshrl.u32 %v1548, 7
    %v1550 = vsub.s32 %v646, %v1549
    %v1551 = vrot.slane %v1450, %v1550
    %v1552 = vsel %vm651, %v1551, %v1547
    %v1553 = vlaneseq
    %v1554 = vshrl.u32 %v1553, 7
    %v1555 = vsub.s32 %v558, %v1554
    %v1556 = vrot.slane %v1453, %v1555
    %v1557 = vlaneseq
    %v1558 = vshrl.u32 %v1557, 7
    %v1559 = vsub.s32 %v646, %v1558
    %v1560 = vrot.slane %v1456, %v1559
    %v1561 = vsel %vm651, %v1560, %v1556
    %v1562 = vlaneseq
    %v1563 = vshrl.u32 %v1562, 7
    %v1564 = vsub.s32 %v558, %v1563
    %v1565 = vrot.slane %v1459, %v1564
    %v1566 = vlaneseq
    %v1567 = vshrl.u32 %v1566, 7
    %v1568 = vsub.s32 %v646, %v1567
    %v1569 = vrot.slane %v1462, %v1568
    %v1570 = vsel %vm651, %v1569, %v1565
    %v1571 = vlaneseq
    %v1572 = vshrl.u32 %v1571, 7
    %v1573 = vsub.s32 %v558, %v1572
    %v1574 = vrot.slane %v1465, %v1573
    %v1575 = vlaneseq
    %v1576 = vshrl.u32 %v1575, 7
    %v1577 = vsub.s32 %v646, %v1576
    %v1578 = vrot.slane %v1468, %v1577
    %v1579 = vsel %vm651, %v1578, %v1574
    %v1580 = vlaneseq
    %v1581 = vshrl.u32 %v1580, 7
    %v1582 = vsub.s32 %v558, %v1581
    %v1583 = vrot.slane %v1471, %v1582
    %v1584 = vlaneseq
    %v1585 = vshrl.u32 %v1584, 7
    %v1586 = vsub.s32 %v646, %v1585
    %v1587 = vrot.slane %v1474, %v1586
    %v1588 = vsel %vm651, %v1587, %v1583
    %v1589 = vlaneseq
    %v1590 = vshrl.u32 %v1589, 7
    %v1591 = vsub.s32 %v558, %v1590
    %v1592 = vrot.slane %v1477, %v1591
    %v1593 = vlaneseq
    %v1594 = vshrl.u32 %v1593, 7
    %v1595 = vsub.s32 %v646, %v1594
    %v1596 = vrot.slane %v1480, %v1595
    %v1597 = vsel %vm651, %v1596, %v1592
    %v1598 = vlaneseq
    %v1599 = vshrl.u32 %v1598, 7
    %v1600 = vsub.s32 %v558, %v1599
    %v1601 = vrot.slane %v1483, %v1600
    %v1602 = vlaneseq
    %v1603 = vshrl.u32 %v1602, 7
    %v1604 = vsub.s32 %v646, %v1603
    %v1605 = vrot.slane %v1486, %v1604
    %v1606 = vsel %vm651, %v1605, %v1601
    %v1607 = vlaneseq
    %v1608 = vshrl.u32 %v1607, 7
    %v1609 = vsub.s32 %v558, %v1608
    %v1610 = vrot.slane %v1489, %v1609
    %v1611 = vlaneseq
    %v1612 = vshrl.u32 %v1611, 7
    %v1613 = vsub.s32 %v646, %v1612
    %v1614 = vrot.slane %v1492, %v1613
    %v1615 = vsel %vm651, %v1614, %v1610
    %v1616 = vlaneseq
    %v1617 = vshrl.u32 %v1616, 7
    %v1618 = vsub.s32 %v558, %v1617
    %v1619 = vrot.slane %v1495, %v1618
    %v1620 = vlaneseq
    %v1621 = vshrl.u32 %v1620, 7
    %v1622 = vsub.s32 %v646, %v1621
    %v1623 = vrot.slane %v1498, %v1622
    %v1624 = vsel %vm651, %v1623, %v1619
    %v1625 = vlaneseq
    %v1626 = vshrl.u32 %v1625, 7
    %v1627 = vsub.s32 %v558, %v1626
    %v1628 = vrot.slane %v1501, %v1627
    %v1629 = vlaneseq
    %v1630 = vshrl.u32 %v1629, 7
    %v1631 = vsub.s32 %v646, %v1630
    %v1632 = vrot.slane %v1504, %v1631
    %v1633 = vsel %vm651, %v1632, %v1628
    %v1634 = vlaneseq
    %v1635 = vshrl.u32 %v1634, 7
    %v1636 = vsub.s32 %v558, %v1635
    %v1637 = vrot.slane %v1507, %v1636
    %v1638 = vlaneseq
    %v1639 = vshrl.u32 %v1638, 7
    %v1640 = vsub.s32 %v646, %v1639
    %v1641 = vrot.slane %v1510, %v1640
    %v1642 = vsel %vm651, %v1641, %v1637
    %v1643 = vlaneseq
    %v1644 = vshrl.u32 %v1643, 7
    %v1645 = vsub.s32 %v558, %v1644
    %v1646 = vrot.slane %v1513, %v1645
    %v1647 = vlaneseq
    %v1648 = vshrl.u32 %v1647, 7
    %v1649 = vsub.s32 %v646, %v1648
    %v1650 = vrot.slane %v1516, %v1649
    %v1651 = vsel %vm651, %v1650, %v1646
    %v1652 = vlaneseq
    %v1653 = vshrl.u32 %v1652, 7
    %v1654 = vsub.s32 %v558, %v1653
    %v1655 = vrot.slane %v1519, %v1654
    %v1656 = vlaneseq
    %v1657 = vshrl.u32 %v1656, 7
    %v1658 = vsub.s32 %v646, %v1657
    %v1659 = vrot.slane %v1522, %v1658
    %v1660 = vsel %vm651, %v1659, %v1655
    %v1661 = vlaneseq
    %v1662 = vshrl.u32 %v1661, 7
    %v1663 = vsub.s32 %v558, %v1662
    %v1664 = vrot.slane %v1525, %v1663
    %v1665 = vlaneseq
    %v1666 = vshrl.u32 %v1665, 7
    %v1667 = vsub.s32 %v646, %v1666
    %v1668 = vrot.slane %v1528, %v1667
    %v1669 = vsel %vm651, %v1668, %v1664
    %v1670 = vlaneseq
    %v1671 = vshrl.u32 %v1670, 7
    %v1672 = vsub.s32 %v558, %v1671
    %v1673 = vrot.slane %v1531, %v1672
    %v1674 = vlaneseq
    %v1675 = vshrl.u32 %v1674, 7
    %v1676 = vsub.s32 %v646, %v1675
    %v1677 = vrot.slane %v1534, %v1676
    %v1678 = vsel %vm651, %v1677, %v1673
    %v1679 = vsel %vm788, %v1552, %v1543
    %v1680 = vsel %vm790, %v1561, %v1679
    %v1681 = vsel %vm792, %v1570, %v1680
    %v1682 = vsel %vm794, %v1579, %v1681
    %v1683 = vsel %vm796, %v1588, %v1682
    %v1684 = vsel %vm798, %v1597, %v1683
    %v1685 = vsel %vm800, %v1606, %v1684
    %v1686 = vsel %vm788, %v1624, %v1615
    %v1687 = vsel %vm790, %v1633, %v1686
    %v1688 = vsel %vm792, %v1642, %v1687
    %v1689 = vsel %vm794, %v1651, %v1688
    %v1690 = vsel %vm796, %v1660, %v1689
    %v1691 = vsel %vm798, %v1669, %v1690
    %v1692 = vsel %vm800, %v1678, %v1691
    %v1695 = vmul.f32 %v608, %v1685
    %v1696 = vmul.f32 %v609, %v1692
    %v1697 = vsel %vm565, %v1695, 0.0
    %1698 = vadd.xlane.f32.xlu0 %v1697
    %v1699 = vpop.xlane.xlu0 %1698
    %v1700 = vsel %vm565, %v1696, 0.0
    %1701 = vadd.xlane.f32.xlu0 %v1700
    %v1702 = vpop.xlane.xlu0 %1701
    %v1703 = vsub.f32 0.0, %v1699
    %v1704 = vsub.f32 0.0, %v1702
    %v1705 = vsel %vm565, %v608, 0.0
    %1706 = vadd.xlane.f32.xlu0 %v1705
    %v1707 = vpop.xlane.xlu0 %1706
    %v1708 = vsel %vm565, %v609, 0.0
    %1709 = vadd.xlane.f32.xlu0 %v1708
    %v1710 = vpop.xlane.xlu0 %1709
    %vm1711 = vcmask 7168
    %v1712 = vsel %vm1711, %v1703, %v1707
    %v1713 = vsel %vm1711, %v1704, %v1710
    %vm1714 = vcmask 15360
    %1715 = vst.msk [vmem:[%s5] sm:$0xff] %vm1714, %v1712
    %1716 = vst.msk [vmem:[%s5 + $0x8] sm:$0xff] %vm1714, %v1713
    // Predicated region
    $region34: #{tpu_custom_call.1} parent=1 // pred_check
      _
    $region35: #{tpu_custom_call.1} parent=1 // pred_check_branch
      %1718 = sbr.rel (0) target = $region37
    $region36: #{tpu_custom_call.1} parent=1 // pred_region
      _
    $region37: #{tpu_custom_call.1} parent=1 // pred_fallthru
      _
    // Predicated region
    $region38: #{tpu_custom_call.1} parent=1 // pred_check
      _
    $region39: #{tpu_custom_call.1} parent=1 // pred_check_branch
      %1720 = sbr.rel (0) target = $region41
    $region40: #{tpu_custom_call.1} parent=1 // pred_region
      _
    $region41: #{tpu_custom_call.1} parent=1 // pred_fallthru
      _
    %1721 = vsyncpa [#allocation3], 1
    %1722 = vsyncpa [#allocation5], 1

</llo_original>
